<compile_context>
chip_gen: v7x
topology: tpu7x:2x2x1
jax: 0.10.0
libtpu: 0.0.40
codegen_flags: <defaults>
</compile_context>

<pallas_src>
import math

import jax
import jax.numpy as jnp
from jax.experimental import pallas as pl

# ---------------------------- problem sizes ---------------------------------
B = 2            # batch
CIN = 3          # image channels
H = W = 16      # spatial
S = H * W        # flattened spatial positions (256) -> lane-dense (2 x 128)
K = CIN * S      # flattened image size (768)
D = 64           # embedding dim (stand-in for backbone's 512)
C = 8            # feature-map channels (stand-in for backbone's 512)

_EPS = 1e-12                 # torch.nn.functional.normalize default eps
_SCALE = 1.0 / math.sqrt(C)  # attention score scale (applied to tiny feat1)

# Advisory cost for XLA's scheduler (dominated by the (B,S,S) scores + att I/O).
_FLOPS = (2 * (2 * B) * K * D          # embedding projection
          + 2 * (2 * B) * CIN * C * S  # feature-map VPU FMAs
          + 2 * B * C * S * S          # attention scores
          + 5 * B * S * S              # softmax elementwise + column mean
          + 2 * B * C * S              # pooled1 multiply-reduce
          + 2 * (2 * B) * C * D)       # fused pooled projection
_TRANSCENDENTALS = B * S * S           # exp in softmax
_BYTES_ACCESSED = 4 * ((2 * B) * CIN * S + CIN * S * D + CIN * C + C * D
                       + B * 2 * D + B * S * S)


# ----------------------------- Pallas kernel ---------------------------------
def facor_kernel(x_ref, wf_ref, wmap_ref, wp_ref, fs_ref, att_ref):
    """Whole-batch fused FaCoR forward (single invocation, no grid).

    x    : (2B, CIN, S)  rows [0,B) = img1 (BGR-flipped), rows [B,2B) = img2
    wf   : (CIN, S, D)   embedding projection (backbone stub), reshaped (K, D)
    wmap : (CIN, C, 1)   1x1-conv-style channel projection columns
    wp   : (C, D)        projection of pooled context into embedding dim
    fs   : (B, 2D)       [f1s | f2s] packed lane-dense (128 lanes)
    att  : (B, S, S)     softmax attention map (rows: img1 pos, cols: img2 pos)
    """
    x = x_ref[...]                                                   # (2B,CIN,S)

    # ---- backbone stub: embeddings for all 2B images (accumulate over CIN) --
    f = jnp.dot(x[:, 0, :], wf_ref[0], preferred_element_type=jnp.float32)
    for ci in range(1, CIN):
        f = f + jnp.dot(x[:, ci, :], wf_ref[ci],
                        preferred_element_type=jnp.float32)          # (2B, D)
    # fused L2Norm(dim=1) (torch F.normalize semantics)
    norm = jnp.sqrt(jnp.sum(f * f, axis=1, keepdims=True))
    f = f / jnp.maximum(norm, _EPS)

    # ---- backbone stub: spatial feature maps via VPU broadcast FMAs ---------
    feat = jnp.zeros((2 * B, C, S), jnp.float32)
    for ci in range(CIN):
        feat = feat + wmap_ref[ci] * x[:, ci:ci + 1, :]              # (2B,C,S)
    feat1 = feat[:B]                                                 # (B, C, S)
    feat2 = feat[B:]                                                 # (B, C, S)

    # ---- cross-attention scores (bf16 MXU operands, f32 acc) + f32 softmax --
    q = (feat1 * _SCALE).astype(jnp.bfloat16)
    kk = feat2.astype(jnp.bfloat16)
    scores = jax.lax.dot_general(
        q, kk, dimension_numbers=(((1,), (1,)), ((0,), (0,))),
        preferred_element_type=jnp.float32)                          # (B, S, S)
    m = jnp.max(scores, axis=-1, keepdims=True)
    p = jnp.exp(scores - m)
    l = jnp.sum(p, axis=-1, keepdims=True)
    att = p / l                                                      # exact softmax
    att_ref[...] = att

    # ---- pooled cross-attended context (no M=1 MXU dots) --------------------
    # mean_q(att @ feat2^T) == colmean(att) . feat2  -> VPU multiply + lane reduce
    colmean = jnp.mean(att, axis=1)                                  # (B, S)
    pooled1 = jnp.sum(colmean[:, None, :] * feat2, axis=-1)          # (B, C)
    # mean_k(att^T @ feat1^T) == mean_s(feat1)  (softmax rows sum to 1)
    pooled2 = jnp.mean(feat1, axis=-1)                               # (B, C)
    pooled = jnp.concatenate([pooled1, pooled2], axis=0)             # (2B, C)

    # ---- fused embeddings: one (2B,C)@(C,D) projection, lane-dense packing --
    fs = f + jnp.dot(pooled, wp_ref[...], preferred_element_type=jnp.float32)
    fs_ref[...] = jnp.concatenate([fs[:B], fs[B:]], axis=-1)         # (B, 2D)


# ------------------------------ wrapper ---------------------------------------
_facor_call = pl.pallas_call(
    facor_kernel,
    out_shape=(jax.ShapeDtypeStruct((B, 2 * D), jnp.float32),
               jax.ShapeDtypeStruct((B, S, S), jnp.float32)),
    in_specs=[
        pl.BlockSpec((2 * B, CIN, S), lambda: (0, 0, 0)),   # images (both)
        pl.BlockSpec((CIN, S, D), lambda: (0, 0, 0)),       # wf reshaped
        pl.BlockSpec((CIN, C, 1), lambda: (0, 0, 0)),       # wmap columns
        pl.BlockSpec((C, D), lambda: (0, 0)),               # wp
    ],
    out_specs=(
        pl.BlockSpec((B, 2 * D), lambda: (0, 0)),           # [f1s|f2s]
        pl.BlockSpec((B, S, S), lambda: (0, 0, 0)),         # attention map
    ),
    cost_estimate=pl.CostEstimate(flops=_FLOPS,
                                  transcendentals=_TRANSCENDENTALS,
                                  bytes_accessed=_BYTES_ACCESSED),
)


def _prep_images(img1, img2):
    """BGR flip (idx=[2,1,0]) + lane-dense layout glue. imgs: (B, 3, H, W)."""
    x1 = img1[:, ::-1, :, :].reshape(B, CIN, S)
    x2 = img2[:, ::-1, :, :].reshape(B, CIN, S)
    return jnp.concatenate([x1, x2], axis=0)                # (2B, CIN, S)


def init_params():
    """Deterministic synthetic parameters (no checkpoint loading)."""
    kf, km, kp = jax.random.split(jax.random.PRNGKey(42), 3)
    wf = jax.random.normal(kf, (K, D), jnp.float32) * (1.0 / math.sqrt(K))
    wmap = jax.random.normal(km, (CIN, C), jnp.float32) * (1.0 / math.sqrt(CIN))
    wp = jax.random.normal(kp, (C, D), jnp.float32) * (1.0 / math.sqrt(C))
    return {"wf": wf, "wmap": wmap, "wp": wp}


@jax.jit
def facor_forward(img1, img2, params):
    """FaCoR.forward((img1, img2)) -> (f1s, f2s, attention_map)."""
    x = _prep_images(img1, img2)
    fs, attention_map = _facor_call(
        x,
        params["wf"].reshape(CIN, S, D),
        params["wmap"].reshape(CIN, C, 1),
        params["wp"])
    f1s, f2s = fs[:, :D], fs[:, D:]
    return f1s, f2s, attention_map


# ------------------------------- main -----------------------------------------
if __name__ == "__main__":
    key = jax.random.PRNGKey(0)
    k1, k2 = jax.random.split(key)
    img1 = jax.random.normal(k1, (B, CIN, H, W), jnp.float32)
    img2 = jax.random.normal(k2, (B, CIN, H, W), jnp.float32)

    params = init_params()
    f1s, f2s, att = facor_forward(img1, img2, params)
    jax.block_until_ready((f1s, f2s, att))

    assert f1s.shape == (B, D) and f2s.shape == (B, D) and att.shape == (B, S, S)
    assert bool(jnp.all(jnp.isfinite(f1s))) and bool(jnp.all(jnp.isfinite(f2s)))
    assert bool(jnp.all(jnp.isfinite(att)))
    # exact softmax normalization -> rows sum to 1 within f32 accumulation noise
    assert bool(jnp.allclose(jnp.sum(att, axis=-1), 1.0, atol=1e-5))

    print("KERNEL_OK")
</pallas_src>

<mosaic_0001>
module attributes {stable_mosaic.version = 11 : i64} {
  func.func @facor_kernel(%arg0: memref<4x3x256xf32, #tpu.memory_space<vmem>>, %arg1: memref<3x256x64xf32, #tpu.memory_space<vmem>>, %arg2: memref<3x8x1xf32, #tpu.memory_space<vmem>>, %arg3: memref<8x64xf32, #tpu.memory_space<vmem>>, %arg4: memref<2x128xf32, #tpu.memory_space<vmem>>, %arg5: memref<2x256x256xf32, #tpu.memory_space<vmem>>) attributes {dimension_semantics = [], scalar_prefetch = 0 : i64, scratch_operands = 0 : i64, tpu.core_type = #tpu.core_type<tc>} {
    %c0 = arith.constant 0 : index
    %c0_0 = arith.constant 0 : index
    %c0_1 = arith.constant 0 : index
    %0 = vector.load %arg0[%c0, %c0_0, %c0_1] : memref<4x3x256xf32, #tpu.memory_space<vmem>>, vector<4x3x256xf32>
    %1 = vector.extract_strided_slice %0 {offsets = [0, 0, 0], sizes = [4, 1, 256], strides = [1, 1, 1]} : vector<4x3x256xf32> to vector<4x1x256xf32>
    %2 = vector.shape_cast %1 : vector<4x1x256xf32> to vector<4x256xf32>
    %c0_2 = arith.constant 0 : index
    %c0_3 = arith.constant 0 : index
    %c0_4 = arith.constant 0 : index
    %3 = vector.load %arg1[%c0_2, %c0_3, %c0_4] : memref<3x256x64xf32, #tpu.memory_space<vmem>>, vector<1x256x64xf32>
    %4 = vector.shape_cast %3 : vector<1x256x64xf32> to vector<256x64xf32>
    %cst = arith.constant dense<0.000000e+00> : vector<4x64xf32>
    %5 = tpu.matmul %2, %4, %cst {dimension_numbers = #tpu.dot_dimension_numbers<[1], [0], [0], [1], [0, 0, 1, 1], [], []>} : vector<4x256xf32>, vector<256x64xf32>, vector<4x64xf32> -> vector<4x64xf32>
    %6 = vector.extract_strided_slice %0 {offsets = [0, 1, 0], sizes = [4, 1, 256], strides = [1, 1, 1]} : vector<4x3x256xf32> to vector<4x1x256xf32>
    %7 = vector.shape_cast %6 : vector<4x1x256xf32> to vector<4x256xf32>
    %c1 = arith.constant 1 : index
    %c0_5 = arith.constant 0 : index
    %c0_6 = arith.constant 0 : index
    %8 = vector.load %arg1[%c1, %c0_5, %c0_6] : memref<3x256x64xf32, #tpu.memory_space<vmem>>, vector<1x256x64xf32>
    %9 = vector.shape_cast %8 : vector<1x256x64xf32> to vector<256x64xf32>
    %cst_7 = arith.constant dense<0.000000e+00> : vector<4x64xf32>
    %10 = tpu.matmul %7, %9, %cst_7 {dimension_numbers = #tpu.dot_dimension_numbers<[1], [0], [0], [1], [0, 0, 1, 1], [], []>} : vector<4x256xf32>, vector<256x64xf32>, vector<4x64xf32> -> vector<4x64xf32>
    %11 = arith.addf %5, %10 : vector<4x64xf32>
    %12 = vector.extract_strided_slice %0 {offsets = [0, 2, 0], sizes = [4, 1, 256], strides = [1, 1, 1]} : vector<4x3x256xf32> to vector<4x1x256xf32>
    %13 = vector.shape_cast %12 : vector<4x1x256xf32> to vector<4x256xf32>
    %c2 = arith.constant 2 : index
    %c0_8 = arith.constant 0 : index
    %c0_9 = arith.constant 0 : index
    %14 = vector.load %arg1[%c2, %c0_8, %c0_9] : memref<3x256x64xf32, #tpu.memory_space<vmem>>, vector<1x256x64xf32>
    %15 = vector.shape_cast %14 : vector<1x256x64xf32> to vector<256x64xf32>
    %cst_10 = arith.constant dense<0.000000e+00> : vector<4x64xf32>
    %16 = tpu.matmul %13, %15, %cst_10 {dimension_numbers = #tpu.dot_dimension_numbers<[1], [0], [0], [1], [0, 0, 1, 1], [], []>} : vector<4x256xf32>, vector<256x64xf32>, vector<4x64xf32> -> vector<4x64xf32>
    %17 = arith.addf %11, %16 : vector<4x64xf32>
    %18 = arith.mulf %17, %17 : vector<4x64xf32>
    %cst_11 = arith.constant dense<0.000000e+00> : vector<4xf32>
    %19 = vector.multi_reduction <add>, %18, %cst_11 [1] : vector<4x64xf32> to vector<4xf32>
    %20 = vector.shape_cast %19 : vector<4xf32> to vector<4x1xf32>
    %21 = math.sqrt %20 : vector<4x1xf32>
    %cst_12 = arith.constant 9.99999996E-13 : f32
    %22 = vector.broadcast %cst_12 : f32 to vector<4x1xf32>
    %23 = arith.maximumf %21, %22 : vector<4x1xf32>
    %24 = vector.broadcast %23 : vector<4x1xf32> to vector<4x64xf32>
    %25 = arith.divf %17, %24 : vector<4x64xf32>
    %cst_13 = arith.constant 0.000000e+00 : f32
    %26 = vector.broadcast %cst_13 : f32 to vector<4x8x256xf32>
    %c0_14 = arith.constant 0 : index
    %c0_15 = arith.constant 0 : index
    %c0_16 = arith.constant 0 : index
    %27 = vector.load %arg2[%c0_14, %c0_15, %c0_16] : memref<3x8x1xf32, #tpu.memory_space<vmem>>, vector<1x8x1xf32>
    %28 = vector.shape_cast %27 : vector<1x8x1xf32> to vector<8x1xf32>
    %29 = vector.extract_strided_slice %0 {offsets = [0, 0, 0], sizes = [4, 1, 256], strides = [1, 1, 1]} : vector<4x3x256xf32> to vector<4x1x256xf32>
    %30 = vector.shape_cast %28 : vector<8x1xf32> to vector<1x8x1xf32>
    %31 = vector.broadcast %30 : vector<1x8x1xf32> to vector<4x8x256xf32>
    %32 = vector.broadcast %29 : vector<4x1x256xf32> to vector<4x8x256xf32>
    %33 = arith.mulf %31, %32 : vector<4x8x256xf32>
    %34 = arith.addf %26, %33 : vector<4x8x256xf32>
    %c1_17 = arith.constant 1 : index
    %c0_18 = arith.constant 0 : index
    %c0_19 = arith.constant 0 : index
    %35 = vector.load %arg2[%c1_17, %c0_18, %c0_19] : memref<3x8x1xf32, #tpu.memory_space<vmem>>, vector<1x8x1xf32>
    %36 = vector.shape_cast %35 : vector<1x8x1xf32> to vector<8x1xf32>
    %37 = vector.extract_strided_slice %0 {offsets = [0, 1, 0], sizes = [4, 1, 256], strides = [1, 1, 1]} : vector<4x3x256xf32> to vector<4x1x256xf32>
    %38 = vector.shape_cast %36 : vector<8x1xf32> to vector<1x8x1xf32>
    %39 = vector.broadcast %38 : vector<1x8x1xf32> to vector<4x8x256xf32>
    %40 = vector.broadcast %37 : vector<4x1x256xf32> to vector<4x8x256xf32>
    %41 = arith.mulf %39, %40 : vector<4x8x256xf32>
    %42 = arith.addf %34, %41 : vector<4x8x256xf32>
    %c2_20 = arith.constant 2 : index
    %c0_21 = arith.constant 0 : index
    %c0_22 = arith.constant 0 : index
    %43 = vector.load %arg2[%c2_20, %c0_21, %c0_22] : memref<3x8x1xf32, #tpu.memory_space<vmem>>, vector<1x8x1xf32>
    %44 = vector.shape_cast %43 : vector<1x8x1xf32> to vector<8x1xf32>
    %45 = vector.extract_strided_slice %0 {offsets = [0, 2, 0], sizes = [4, 1, 256], strides = [1, 1, 1]} : vector<4x3x256xf32> to vector<4x1x256xf32>
    %46 = vector.shape_cast %44 : vector<8x1xf32> to vector<1x8x1xf32>
    %47 = vector.broadcast %46 : vector<1x8x1xf32> to vector<4x8x256xf32>
    %48 = vector.broadcast %45 : vector<4x1x256xf32> to vector<4x8x256xf32>
    %49 = arith.mulf %47, %48 : vector<4x8x256xf32>
    %50 = arith.addf %42, %49 : vector<4x8x256xf32>
    %51 = vector.extract_strided_slice %50 {offsets = [0, 0, 0], sizes = [2, 8, 256], strides = [1, 1, 1]} : vector<4x8x256xf32> to vector<2x8x256xf32>
    %52 = vector.extract_strided_slice %50 {offsets = [2, 0, 0], sizes = [2, 8, 256], strides = [1, 1, 1]} : vector<4x8x256xf32> to vector<2x8x256xf32>
    %cst_23 = arith.constant 0.353553385 : f32
    %53 = vector.broadcast %cst_23 : f32 to vector<2x8x256xf32>
    %54 = arith.mulf %51, %53 : vector<2x8x256xf32>
    %55 = arith.truncf %54 : vector<2x8x256xf32> to vector<2x8x256xbf16>
    %56 = arith.truncf %52 : vector<2x8x256xf32> to vector<2x8x256xbf16>
    %cst_24 = arith.constant dense<0.000000e+00> : vector<2x256x256xf32>
    %57 = tpu.matmul %55, %56, %cst_24 {dimension_numbers = #tpu.dot_dimension_numbers<[1], [1], [2], [2], [0, 0, 0, 2, 1, 2], [0], [0]>} : vector<2x8x256xbf16>, vector<2x8x256xbf16>, vector<2x256x256xf32> -> vector<2x256x256xf32>
    %cst_25 = arith.constant dense<0xFF800000> : vector<2x256xf32>
    %58 = vector.multi_reduction <maximumf>, %57, %cst_25 [2] : vector<2x256x256xf32> to vector<2x256xf32>
    %59 = vector.shape_cast %58 : vector<2x256xf32> to vector<2x256x1xf32>
    %60 = vector.broadcast %59 : vector<2x256x1xf32> to vector<2x256x256xf32>
    %61 = arith.subf %57, %60 : vector<2x256x256xf32>
    %62 = math.exp %61 : vector<2x256x256xf32>
    %cst_26 = arith.constant dense<0.000000e+00> : vector<2x256xf32>
    %63 = vector.multi_reduction <add>, %62, %cst_26 [2] : vector<2x256x256xf32> to vector<2x256xf32>
    %64 = vector.shape_cast %63 : vector<2x256xf32> to vector<2x256x1xf32>
    %65 = vector.broadcast %64 : vector<2x256x1xf32> to vector<2x256x256xf32>
    %66 = arith.divf %62, %65 : vector<2x256x256xf32>
    %c0_27 = arith.constant 0 : index
    %c0_28 = arith.constant 0 : index
    %c0_29 = arith.constant 0 : index
    %67 = vector.load %arg5[%c0_27, %c0_28, %c0_29] : memref<2x256x256xf32, #tpu.memory_space<vmem>>, vector<2x256x256xf32>
    tpu.vector_store %arg5[%c0_27, %c0_28, %c0_29], %66 {strides = array<i32>} : memref<2x256x256xf32, #tpu.memory_space<vmem>>, vector<2x256x256xf32>,
    %cst_30 = arith.constant dense<0.000000e+00> : vector<2x256xf32>
    %68 = vector.multi_reduction <add>, %66, %cst_30 [1] : vector<2x256x256xf32> to vector<2x256xf32>
    %cst_31 = arith.constant 2.560000e+02 : f32
    %69 = vector.broadcast %cst_31 : f32 to vector<2x256xf32>
    %70 = arith.divf %68, %69 : vector<2x256xf32>
    %71 = vector.shape_cast %70 : vector<2x256xf32> to vector<2x1x256xf32>
    %72 = vector.broadcast %71 : vector<2x1x256xf32> to vector<2x8x256xf32>
    %73 = arith.mulf %72, %52 : vector<2x8x256xf32>
    %cst_32 = arith.constant dense<0.000000e+00> : vector<2x8xf32>
    %74 = vector.multi_reduction <add>, %73, %cst_32 [2] : vector<2x8x256xf32> to vector<2x8xf32>
    %cst_33 = arith.constant dense<0.000000e+00> : vector<2x8xf32>
    %75 = vector.multi_reduction <add>, %51, %cst_33 [2] : vector<2x8x256xf32> to vector<2x8xf32>
    %cst_34 = arith.constant 2.560000e+02 : f32
    %76 = vector.broadcast %cst_34 : f32 to vector<2x8xf32>
    %77 = arith.divf %75, %76 : vector<2x8xf32>
    %78 = tpu.concatenate %74, %77 in 0 : vector<2x8xf32>, vector<2x8xf32> -> vector<4x8xf32>
    %c0_35 = arith.constant 0 : index
    %c0_36 = arith.constant 0 : index
    %79 = vector.load %arg3[%c0_35, %c0_36] : memref<8x64xf32, #tpu.memory_space<vmem>>, vector<8x64xf32>
    %cst_37 = arith.constant dense<0.000000e+00> : vector<4x64xf32>
    %80 = tpu.matmul %78, %79, %cst_37 {dimension_numbers = #tpu.dot_dimension_numbers<[1], [0], [0], [1], [0, 0, 1, 1], [], []>} : vector<4x8xf32>, vector<8x64xf32>, vector<4x64xf32> -> vector<4x64xf32>
    %81 = arith.addf %25, %80 : vector<4x64xf32>
    %82 = vector.extract_strided_slice %81 {offsets = [0, 0], sizes = [2, 64], strides = [1, 1]} : vector<4x64xf32> to vector<2x64xf32>
    %83 = vector.extract_strided_slice %81 {offsets = [2, 0], sizes = [2, 64], strides = [1, 1]} : vector<4x64xf32> to vector<2x64xf32>
    %84 = tpu.concatenate %82, %83 in 1 : vector<2x64xf32>, vector<2x64xf32> -> vector<2x128xf32>
    %c0_38 = arith.constant 0 : index
    %c0_39 = arith.constant 0 : index
    %85 = vector.load %arg4[%c0_38, %c0_39] : memref<2x128xf32, #tpu.memory_space<vmem>>, vector<2x128xf32>
    tpu.vector_store %arg4[%c0_38, %c0_39], %84 {strides = array<i32>} : memref<2x128xf32, #tpu.memory_space<vmem>>, vector<2x128xf32>,
    return
  }
}

</mosaic_0001>

<llo_original>
// kernel: facor_forward.1
$region0: #{facor_forward.1}
  #allocation0 [shape = 'u32[]', space=smem, size = 0x4, offset = 0x4, fixed_abs, tag = 'smem constant byte address 0x4 - core index']
  #allocation1 [shape = 'u32[144,128]{1,0:T(1,128)}', space=vmem, size = 0x12000, scoped, tag = 'internal scratch']
  %s0 = inlined_call_operand.vmem [shape: f32[4,3,256], index: 0, kind: input, shape index: {}]
  %s1 = inlined_call_operand.vmem [shape: f32[3,256,64], index: 1, kind: input, shape index: {}]
  %s2 = inlined_call_operand.vmem [shape: f32[3,8,1], index: 2, kind: input, shape index: {}]
  %s3 = inlined_call_operand.vmem [shape: f32[8,64], index: 3, kind: input, shape index: {}]
  %s4 = inlined_call_operand.vmem [shape: f32[2,128], index: 4, kind: output, shape index: {0}]
  %s5 = inlined_call_operand.hbm [shape: f32[2,256,256], index: 5, kind: output, shape index: {1}]
  %6 = xla_tuple %s4, %s5
  %s7 = sld [smem:[#allocation0]]
  $region34: #{facor_forward.1} parent=0
    _
  %s9 = ssub.s32 1, %s7
  %s10 = scalar_select 0, %s9, %s7
  $region1: #{facor_forward.1} parent=0
    #allocation2 [shape = 'u8[524288]{0}', space=vmem, size = 0x80000, scoped, tag = 'output window, operand 1, single buffered']
    #allocation3 [shape = 's32[1]{0}', space=sflag, size = 0x4, scoped, tag = 'scoped memory for facor_forward.1']
    %11 = vsyncpa [#allocation3], 0
    // Predicated region
    $region2: #{facor_forward.1} parent=1 // pred_check
      _
    $region3: #{facor_forward.1} parent=1 // pred_check_branch
      %13 = sbr.rel (0) target = $region5
    $region4: #{facor_forward.1} parent=1 // pred_region
      _
    $region5: #{facor_forward.1} parent=1 // pred_fallthru
      _
    // Predicated region
    $region6: #{facor_forward.1} parent=1 // pred_check
      _
    $region7: #{facor_forward.1} parent=1 // pred_check_branch
      %15 = sbr.rel (0) target = $region9
    $region8: #{facor_forward.1} parent=1 // pred_region
      _
    $region9: #{facor_forward.1} parent=1 // pred_fallthru
      _
    // Predicated region
    $region10: #{facor_forward.1} parent=1 // pred_check
      _
    $region11: #{facor_forward.1} parent=1 // pred_check_branch
      %17 = sbr.rel (0) target = $region13
    $region12: #{facor_forward.1} parent=1 // pred_region
      _
    $region13: #{facor_forward.1} parent=1 // pred_fallthru
      _
    // Predicated region
    $region14: #{facor_forward.1} parent=1 // pred_check
      _
    $region15: #{facor_forward.1} parent=1 // pred_check_branch
      %19 = sbr.rel (0) target = $region17
    $region16: #{facor_forward.1} parent=1 // pred_region
      _
    $region17: #{facor_forward.1} parent=1 // pred_fallthru
      _
    %v21 = vld [vmem:[%s0] sm:$0x77]
    %v22 = vld [vmem:[%s0 + $0x8] sm:$0x77]
    %v23 = vld [vmem:[%s0 + $0x10] sm:$0x77]
    %v24 = vld [vmem:[%s0 + $0x18] sm:$0x77]
    %v25 = vld [vmem:[%s1] sm:$0xff]
    %v26 = vld [vmem:[%s1 + $0x8] sm:$0xff]
    %v27 = vld [vmem:[%s1 + $0x10] sm:$0xff]
    %v28 = vld [vmem:[%s1 + $0x18] sm:$0xff]
    %v29 = vld [vmem:[%s1 + $0x20] sm:$0xff]
    %v30 = vld [vmem:[%s1 + $0x28] sm:$0xff]
    %v31 = vld [vmem:[%s1 + $0x30] sm:$0xff]
    %v32 = vld [vmem:[%s1 + $0x38] sm:$0xff]
    %v33 = vld [vmem:[%s1 + $0x40] sm:$0xff]
    %v34 = vld [vmem:[%s1 + $0x48] sm:$0xff]
    %v35 = vld [vmem:[%s1 + $0x50] sm:$0xff]
    %v36 = vld [vmem:[%s1 + $0x58] sm:$0xff]
    %v37 = vld [vmem:[%s1 + $0x60] sm:$0xff]
    %v38 = vld [vmem:[%s1 + $0x68] sm:$0xff]
    %v39 = vld [vmem:[%s1 + $0x70] sm:$0xff]
    %v40 = vld [vmem:[%s1 + $0x78] sm:$0xff]
    %v41 = vld [vmem:[%s1 + $0x80] sm:$0xff]
    %v42 = vld [vmem:[%s1 + $0x88] sm:$0xff]
    %v43 = vld [vmem:[%s1 + $0x90] sm:$0xff]
    %v44 = vld [vmem:[%s1 + $0x98] sm:$0xff]
    %v45 = vld [vmem:[%s1 + $0xa0] sm:$0xff]
    %v46 = vld [vmem:[%s1 + $0xa8] sm:$0xff]
    %v47 = vld [vmem:[%s1 + $0xb0] sm:$0xff]
    %v48 = vld [vmem:[%s1 + $0xb8] sm:$0xff]
    %v49 = vld [vmem:[%s1 + $0xc0] sm:$0xff]
    %v50 = vld [vmem:[%s1 + $0xc8] sm:$0xff]
    %v51 = vld [vmem:[%s1 + $0xd0] sm:$0xff]
    %v52 = vld [vmem:[%s1 + $0xd8] sm:$0xff]
    %v53 = vld [vmem:[%s1 + $0xe0] sm:$0xff]
    %v54 = vld [vmem:[%s1 + $0xe8] sm:$0xff]
    %v55 = vld [vmem:[%s1 + $0xf0] sm:$0xff]
    %v56 = vld [vmem:[%s1 + $0xf8] sm:$0xff]
    %s57 = scalar_lea.vmem %s1, 256
    %v58 = vld [vmem:[%s57] sm:$0xff]
    %v59 = vld [vmem:[%s57 + $0x8] sm:$0xff]
    %v60 = vld [vmem:[%s57 + $0x10] sm:$0xff]
    %v61 = vld [vmem:[%s57 + $0x18] sm:$0xff]
    %v62 = vld [vmem:[%s57 + $0x20] sm:$0xff]
    %v63 = vld [vmem:[%s57 + $0x28] sm:$0xff]
    %v64 = vld [vmem:[%s57 + $0x30] sm:$0xff]
    %v65 = vld [vmem:[%s57 + $0x38] sm:$0xff]
    %v66 = vld [vmem:[%s57 + $0x40] sm:$0xff]
    %v67 = vld [vmem:[%s57 + $0x48] sm:$0xff]
    %v68 = vld [vmem:[%s57 + $0x50] sm:$0xff]
    %v69 = vld [vmem:[%s57 + $0x58] sm:$0xff]
    %v70 = vld [vmem:[%s57 + $0x60] sm:$0xff]
    %v71 = vld [vmem:[%s57 + $0x68] sm:$0xff]
    %v72 = vld [vmem:[%s57 + $0x70] sm:$0xff]
    %v73 = vld [vmem:[%s57 + $0x78] sm:$0xff]
    %v74 = vld [vmem:[%s57 + $0x80] sm:$0xff]
    %v75 = vld [vmem:[%s57 + $0x88] sm:$0xff]
    %v76 = vld [vmem:[%s57 + $0x90] sm:$0xff]
    %v77 = vld [vmem:[%s57 + $0x98] sm:$0xff]
    %v78 = vld [vmem:[%s57 + $0xa0] sm:$0xff]
    %v79 = vld [vmem:[%s57 + $0xa8] sm:$0xff]
    %v80 = vld [vmem:[%s57 + $0xb0] sm:$0xff]
    %v81 = vld [vmem:[%s57 + $0xb8] sm:$0xff]
    %v82 = vld [vmem:[%s57 + $0xc0] sm:$0xff]
    %v83 = vld [vmem:[%s57 + $0xc8] sm:$0xff]
    %v84 = vld [vmem:[%s57 + $0xd0] sm:$0xff]
    %v85 = vld [vmem:[%s57 + $0xd8] sm:$0xff]
    %v86 = vld [vmem:[%s57 + $0xe0] sm:$0xff]
    %v87 = vld [vmem:[%s57 + $0xe8] sm:$0xff]
    %v88 = vld [vmem:[%s57 + $0xf0] sm:$0xff]
    %v89 = vld [vmem:[%s57 + $0xf8] sm:$0xff]
    %v94 = vlaneseq
    %v95 = vshrl.u32 %v94, 7
    %v96 = vsub.s32 1, %v95
    %v97 = vrot.slane %v21, %v96
    %v98 = vlaneseq
    %v99 = vshrl.u32 %v98, 7
    %v100 = vsub.s32 5, %v99
    %v101 = vrot.slane %v21, %v100
    %v102 = vlaneseq
    %v103 = vshrl.u32 %v102, 7
    %v104 = vsub.s32 1, %v103
    %v105 = vrot.slane %v22, %v104
    %v106 = vlaneseq
    %v107 = vshrl.u32 %v106, 7
    %v108 = vsub.s32 5, %v107
    %v109 = vrot.slane %v22, %v108
    %v110 = vlaneseq
    %v111 = vshrl.u32 %v110, 7
    %v112 = vsub.s32 1, %v111
    %v113 = vrot.slane %v23, %v112
    %v114 = vlaneseq
    %v115 = vshrl.u32 %v114, 7
    %v116 = vsub.s32 5, %v115
    %v117 = vrot.slane %v23, %v116
    %v118 = vlaneseq
    %v119 = vshrl.u32 %v118, 7
    %v120 = vsub.s32 1, %v119
    %v121 = vrot.slane %v24, %v120
    %v122 = vlaneseq
    %v123 = vshrl.u32 %v122, 7
    %v124 = vsub.s32 5, %v123
    %v125 = vrot.slane %v24, %v124
    %vm126 = vcmask 1041409
    %v127 = vsel %vm126, %v105, %v97
    %vm128 = vcmask 1042434
    %v129 = vsel %vm128, %v113, %v127
    %vm130 = vcmask 1043459
    %v131 = vsel %vm130, %v121, %v129
    %v132 = vsel %vm126, %v109, %v101
    %v133 = vsel %vm128, %v117, %v132
    %v134 = vsel %vm130, %v125, %v133
    %137 = vmatprep.subr.mxu0 0.0
    %138 = vmatpush1.msra.mxu0 %v58
    %139 = vmatprep.subr.mxu0 0.0
    %140 = vmatpush1.msra.mxu0 %v59
    %141 = vmatprep.subr.mxu0 0.0
    %142 = vmatpush1.msra.mxu0 %v60
    %143 = vmatprep.subr.mxu0 0.0
    %144 = vmatpush1.msra.mxu0 %v61
    %145 = vmatprep.subr.mxu0 0.0
    %146 = vmatpush1.msra.mxu0 %v62
    %147 = vmatprep.subr.mxu0 0.0
    %148 = vmatpush1.msra.mxu0 %v63
    %149 = vmatprep.subr.mxu0 0.0
    %150 = vmatpush1.msra.mxu0 %v64
    %151 = vmatprep.subr.mxu0 0.0
    %152 = vmatpush1.msra.mxu0 %v65
    %153 = vmatprep.subr.mxu0 0.0
    %154 = vmatpush1.msra.mxu0 %v66
    %155 = vmatprep.subr.mxu0 0.0
    %156 = vmatpush1.msra.mxu0 %v67
    %157 = vmatprep.subr.mxu0 0.0
    %158 = vmatpush1.msra.mxu0 %v68
    %159 = vmatprep.subr.mxu0 0.0
    %160 = vmatpush1.msra.mxu0 %v69
    %161 = vmatprep.subr.mxu0 0.0
    %162 = vmatpush1.msra.mxu0 %v70
    %163 = vmatprep.subr.mxu0 0.0
    %164 = vmatpush1.msra.mxu0 %v71
    %165 = vmatprep.subr.mxu0 0.0
    %166 = vmatpush1.msra.mxu0 %v72
    %167 = vmatprep.subr.mxu0 0.0
    %168 = vmatpush1.msra.mxu0 %v73
    %169 = vmatprep.subr.mxu0 0.0
    %170 = vmatpush1.msra.mxu0 %v74
    %171 = vmatprep.subr.mxu0 0.0
    %172 = vmatpush1.msra.mxu0 %v75
    %173 = vmatprep.subr.mxu0 0.0
    %174 = vmatpush1.msra.mxu0 %v76
    %175 = vmatprep.subr.mxu0 0.0
    %176 = vmatpush1.msra.mxu0 %v77
    %177 = vmatprep.subr.mxu0 0.0
    %178 = vmatpush1.msra.mxu0 %v78
    %179 = vmatprep.subr.mxu0 0.0
    %180 = vmatpush1.msra.mxu0 %v79
    %181 = vmatprep.subr.mxu0 0.0
    %182 = vmatpush1.msra.mxu0 %v80
    %183 = vmatprep.subr.mxu0 0.0
    %184 = vmatpush1.msra.mxu0 %v81
    %185 = vmatprep.subr.mxu0 0.0
    %186 = vmatpush1.msra.mxu0 %v82
    %187 = vmatprep.subr.mxu0 0.0
    %188 = vmatpush1.msra.mxu0 %v83
    %189 = vmatprep.subr.mxu0 0.0
    %190 = vmatpush1.msra.mxu0 %v84
    %191 = vmatprep.subr.mxu0 0.0
    %192 = vmatpush1.msra.mxu0 %v85
    %193 = vmatprep.subr.mxu0 0.0
    %194 = vmatpush1.msra.mxu0 %v86
    %195 = vmatprep.subr.mxu0 0.0
    %196 = vmatpush1.msra.mxu0 %v87
    %197 = vmatprep.subr.mxu0 0.0
    %198 = vmatpush1.msra.mxu0 %v88
    %199 = vmatprep.subr.mxu0 0.0
    %200 = vmatpush1.msra.mxu0 %v89
    %201 = vmatprep.mubr.f32.mxu0 %v134
    %202 = vmatmul.mubr.f32.gmra.mrb[0].mxu0 %v131
    %v203 = vpop.f32.mrb[0].mxu0
    %v204 = vadd.f32 0.0, %v203
    %v205 = vpop.f32.mrb[0].mxu0
    %206 = vdwg.mxu0
    %v207 = vlaneseq
    %v208 = vshrl.u32 %v207, 7
    %v209 = vsub.s32 0, %v208
    %v210 = vrot.slane %v21, %v209
    %v211 = vlaneseq
    %v212 = vshrl.u32 %v211, 7
    %v213 = vsub.s32 4, %v212
    %v214 = vrot.slane %v21, %v213
    %v215 = vlaneseq
    %v216 = vshrl.u32 %v215, 7
    %v217 = vsub.s32 0, %v216
    %v218 = vrot.slane %v22, %v217
    %v219 = vlaneseq
    %v220 = vshrl.u32 %v219, 7
    %v221 = vsub.s32 4, %v220
    %v222 = vrot.slane %v22, %v221
    %v223 = vlaneseq
    %v224 = vshrl.u32 %v223, 7
    %v225 = vsub.s32 0, %v224
    %v226 = vrot.slane %v23, %v225
    %v227 = vlaneseq
    %v228 = vshrl.u32 %v227, 7
    %v229 = vsub.s32 4, %v228
    %v230 = vrot.slane %v23, %v229
    %v231 = vlaneseq
    %v232 = vshrl.u32 %v231, 7
    %v233 = vsub.s32 0, %v232
    %v234 = vrot.slane %v24, %v233
    %v235 = vlaneseq
    %v236 = vshrl.u32 %v235, 7
    %v237 = vsub.s32 4, %v236
    %v238 = vrot.slane %v24, %v237
    %v239 = vsel %vm126, %v218, %v210
    %v240 = vsel %vm128, %v226, %v239
    %v241 = vsel %vm130, %v234, %v240
    %v242 = vsel %vm126, %v222, %v214
    %v243 = vsel %vm128, %v230, %v242
    %v244 = vsel %vm130, %v238, %v243
    %247 = vmatprep.subr.mxu0 0.0
    %248 = vmatpush1.msra.mxu0 %v25
    %249 = vmatprep.subr.mxu0 0.0
    %250 = vmatpush1.msra.mxu0 %v26
    %251 = vmatprep.subr.mxu0 0.0
    %252 = vmatpush1.msra.mxu0 %v27
    %253 = vmatprep.subr.mxu0 0.0
    %254 = vmatpush1.msra.mxu0 %v28
    %255 = vmatprep.subr.mxu0 0.0
    %256 = vmatpush1.msra.mxu0 %v29
    %257 = vmatprep.subr.mxu0 0.0
    %258 = vmatpush1.msra.mxu0 %v30
    %259 = vmatprep.subr.mxu0 0.0
    %260 = vmatpush1.msra.mxu0 %v31
    %261 = vmatprep.subr.mxu0 0.0
    %262 = vmatpush1.msra.mxu0 %v32
    %263 = vmatprep.subr.mxu0 0.0
    %264 = vmatpush1.msra.mxu0 %v33
    %265 = vmatprep.subr.mxu0 0.0
    %266 = vmatpush1.msra.mxu0 %v34
    %267 = vmatprep.subr.mxu0 0.0
    %268 = vmatpush1.msra.mxu0 %v35
    %269 = vmatprep.subr.mxu0 0.0
    %270 = vmatpush1.msra.mxu0 %v36
    %271 = vmatprep.subr.mxu0 0.0
    %272 = vmatpush1.msra.mxu0 %v37
    %273 = vmatprep.subr.mxu0 0.0
    %274 = vmatpush1.msra.mxu0 %v38
    %275 = vmatprep.subr.mxu0 0.0
    %276 = vmatpush1.msra.mxu0 %v39
    %277 = vmatprep.subr.mxu0 0.0
    %278 = vmatpush1.msra.mxu0 %v40
    %279 = vmatprep.subr.mxu0 0.0
    %280 = vmatpush1.msra.mxu0 %v41
    %281 = vmatprep.subr.mxu0 0.0
    %282 = vmatpush1.msra.mxu0 %v42
    %283 = vmatprep.subr.mxu0 0.0
    %284 = vmatpush1.msra.mxu0 %v43
    %285 = vmatprep.subr.mxu0 0.0
    %286 = vmatpush1.msra.mxu0 %v44
    %287 = vmatprep.subr.mxu0 0.0
    %288 = vmatpush1.msra.mxu0 %v45
    %289 = vmatprep.subr.mxu0 0.0
    %290 = vmatpush1.msra.mxu0 %v46
    %291 = vmatprep.subr.mxu0 0.0
    %292 = vmatpush1.msra.mxu0 %v47
    %293 = vmatprep.subr.mxu0 0.0
    %294 = vmatpush1.msra.mxu0 %v48
    %295 = vmatprep.subr.mxu0 0.0
    %296 = vmatpush1.msra.mxu0 %v49
    %297 = vmatprep.subr.mxu0 0.0
    %298 = vmatpush1.msra.mxu0 %v50
    %299 = vmatprep.subr.mxu0 0.0
    %300 = vmatpush1.msra.mxu0 %v51
    %301 = vmatprep.subr.mxu0 0.0
    %302 = vmatpush1.msra.mxu0 %v52
    %303 = vmatprep.subr.mxu0 0.0
    %304 = vmatpush1.msra.mxu0 %v53
    %305 = vmatprep.subr.mxu0 0.0
    %306 = vmatpush1.msra.mxu0 %v54
    %307 = vmatprep.subr.mxu0 0.0
    %308 = vmatpush1.msra.mxu0 %v55
    %309 = vmatprep.subr.mxu0 0.0
    %310 = vmatpush1.msra.mxu0 %v56
    %311 = vmatprep.mubr.f32.mxu0 %v244
    %312 = vmatmul.mubr.f32.gmra.mrb[0].mxu0 %v241
    %v313 = vpop.f32.mrb[0].mxu0
    %v314 = vadd.f32 %v204, %v313
    %v315 = vpop.f32.mrb[0].mxu0
    %316 = vdwg.mxu0
    %s317 = scalar_lea.vmem %s1, 512
    %v318 = vld [vmem:[%s317] sm:$0xff]
    %v319 = vld [vmem:[%s317 + $0x8] sm:$0xff]
    %v320 = vld [vmem:[%s317 + $0x10] sm:$0xff]
    %v321 = vld [vmem:[%s317 + $0x18] sm:$0xff]
    %v322 = vld [vmem:[%s317 + $0x20] sm:$0xff]
    %v323 = vld [vmem:[%s317 + $0x28] sm:$0xff]
    %v324 = vld [vmem:[%s317 + $0x30] sm:$0xff]
    %v325 = vld [vmem:[%s317 + $0x38] sm:$0xff]
    %v326 = vld [vmem:[%s317 + $0x40] sm:$0xff]
    %v327 = vld [vmem:[%s317 + $0x48] sm:$0xff]
    %v328 = vld [vmem:[%s317 + $0x50] sm:$0xff]
    %v329 = vld [vmem:[%s317 + $0x58] sm:$0xff]
    %v330 = vld [vmem:[%s317 + $0x60] sm:$0xff]
    %v331 = vld [vmem:[%s317 + $0x68] sm:$0xff]
    %v332 = vld [vmem:[%s317 + $0x70] sm:$0xff]
    %v333 = vld [vmem:[%s317 + $0x78] sm:$0xff]
    %v334 = vld [vmem:[%s317 + $0x80] sm:$0xff]
    %v335 = vld [vmem:[%s317 + $0x88] sm:$0xff]
    %v336 = vld [vmem:[%s317 + $0x90] sm:$0xff]
    %v337 = vld [vmem:[%s317 + $0x98] sm:$0xff]
    %v338 = vld [vmem:[%s317 + $0xa0] sm:$0xff]
    %v339 = vld [vmem:[%s317 + $0xa8] sm:$0xff]
    %v340 = vld [vmem:[%s317 + $0xb0] sm:$0xff]
    %v341 = vld [vmem:[%s317 + $0xb8] sm:$0xff]
    %v342 = vld [vmem:[%s317 + $0xc0] sm:$0xff]
    %v343 = vld [vmem:[%s317 + $0xc8] sm:$0xff]
    %v344 = vld [vmem:[%s317 + $0xd0] sm:$0xff]
    %v345 = vld [vmem:[%s317 + $0xd8] sm:$0xff]
    %v346 = vld [vmem:[%s317 + $0xe0] sm:$0xff]
    %v347 = vld [vmem:[%s317 + $0xe8] sm:$0xff]
    %v348 = vld [vmem:[%s317 + $0xf0] sm:$0xff]
    %v349 = vld [vmem:[%s317 + $0xf8] sm:$0xff]
    %v350 = vlaneseq
    %v351 = vshrl.u32 %v350, 7
    %v352 = vsub.s32 2, %v351
    %v353 = vrot.slane %v21, %v352
    %v354 = vlaneseq
    %v355 = vshrl.u32 %v354, 7
    %v356 = vsub.s32 6, %v355
    %v357 = vrot.slane %v21, %v356
    %v358 = vlaneseq
    %v359 = vshrl.u32 %v358, 7
    %v360 = vsub.s32 2, %v359
    %v361 = vrot.slane %v22, %v360
    %v362 = vlaneseq
    %v363 = vshrl.u32 %v362, 7
    %v364 = vsub.s32 6, %v363
    %v365 = vrot.slane %v22, %v364
    %v366 = vlaneseq
    %v367 = vshrl.u32 %v366, 7
    %v368 = vsub.s32 2, %v367
    %v369 = vrot.slane %v23, %v368
    %v370 = vlaneseq
    %v371 = vshrl.u32 %v370, 7
    %v372 = vsub.s32 6, %v371
    %v373 = vrot.slane %v23, %v372
    %v374 = vlaneseq
    %v375 = vshrl.u32 %v374, 7
    %v376 = vsub.s32 2, %v375
    %v377 = vrot.slane %v24, %v376
    %v378 = vlaneseq
    %v379 = vshrl.u32 %v378, 7
    %v380 = vsub.s32 6, %v379
    %v381 = vrot.slane %v24, %v380
    %v382 = vsel %vm126, %v361, %v353
    %v383 = vsel %vm128, %v369, %v382
    %v384 = vsel %vm130, %v377, %v383
    %v385 = vsel %vm126, %v365, %v357
    %v386 = vsel %vm128, %v373, %v385
    %v387 = vsel %vm130, %v381, %v386
    %390 = vmatprep.subr.mxu0 0.0
    %391 = vmatpush1.msra.mxu0 %v318
    %392 = vmatprep.subr.mxu0 0.0
    %393 = vmatpush1.msra.mxu0 %v319
    %394 = vmatprep.subr.mxu0 0.0
    %395 = vmatpush1.msra.mxu0 %v320
    %396 = vmatprep.subr.mxu0 0.0
    %397 = vmatpush1.msra.mxu0 %v321
    %398 = vmatprep.subr.mxu0 0.0
    %399 = vmatpush1.msra.mxu0 %v322
    %400 = vmatprep.subr.mxu0 0.0
    %401 = vmatpush1.msra.mxu0 %v323
    %402 = vmatprep.subr.mxu0 0.0
    %403 = vmatpush1.msra.mxu0 %v324
    %404 = vmatprep.subr.mxu0 0.0
    %405 = vmatpush1.msra.mxu0 %v325
    %406 = vmatprep.subr.mxu0 0.0
    %407 = vmatpush1.msra.mxu0 %v326
    %408 = vmatprep.subr.mxu0 0.0
    %409 = vmatpush1.msra.mxu0 %v327
    %410 = vmatprep.subr.mxu0 0.0
    %411 = vmatpush1.msra.mxu0 %v328
    %412 = vmatprep.subr.mxu0 0.0
    %413 = vmatpush1.msra.mxu0 %v329
    %414 = vmatprep.subr.mxu0 0.0
    %415 = vmatpush1.msra.mxu0 %v330
    %416 = vmatprep.subr.mxu0 0.0
    %417 = vmatpush1.msra.mxu0 %v331
    %418 = vmatprep.subr.mxu0 0.0
    %419 = vmatpush1.msra.mxu0 %v332
    %420 = vmatprep.subr.mxu0 0.0
    %421 = vmatpush1.msra.mxu0 %v333
    %422 = vmatprep.subr.mxu0 0.0
    %423 = vmatpush1.msra.mxu0 %v334
    %424 = vmatprep.subr.mxu0 0.0
    %425 = vmatpush1.msra.mxu0 %v335
    %426 = vmatprep.subr.mxu0 0.0
    %427 = vmatpush1.msra.mxu0 %v336
    %428 = vmatprep.subr.mxu0 0.0
    %429 = vmatpush1.msra.mxu0 %v337
    %430 = vmatprep.subr.mxu0 0.0
    %431 = vmatpush1.msra.mxu0 %v338
    %432 = vmatprep.subr.mxu0 0.0
    %433 = vmatpush1.msra.mxu0 %v339
    %434 = vmatprep.subr.mxu0 0.0
    %435 = vmatpush1.msra.mxu0 %v340
    %436 = vmatprep.subr.mxu0 0.0
    %437 = vmatpush1.msra.mxu0 %v341
    %438 = vmatprep.subr.mxu0 0.0
    %439 = vmatpush1.msra.mxu0 %v342
    %440 = vmatprep.subr.mxu0 0.0
    %441 = vmatpush1.msra.mxu0 %v343
    %442 = vmatprep.subr.mxu0 0.0
    %443 = vmatpush1.msra.mxu0 %v344
    %444 = vmatprep.subr.mxu0 0.0
    %445 = vmatpush1.msra.mxu0 %v345
    %446 = vmatprep.subr.mxu0 0.0
    %447 = vmatpush1.msra.mxu0 %v346
    %448 = vmatprep.subr.mxu0 0.0
    %449 = vmatpush1.msra.mxu0 %v347
    %450 = vmatprep.subr.mxu0 0.0
    %451 = vmatpush1.msra.mxu0 %v348
    %452 = vmatprep.subr.mxu0 0.0
    %453 = vmatpush1.msra.mxu0 %v349
    %454 = vmatprep.mubr.f32.mxu0 %v387
    %455 = vmatmul.mubr.f32.gmra.mrb[0].mxu0 %v384
    %v456 = vpop.f32.mrb[0].mxu0
    %v457 = vadd.f32 0.0, %v456
    %v458 = vpop.f32.mrb[0].mxu0
    %459 = vdwg.mxu0
    %v460 = vadd.f32 %v314, %v457
    %v461 = vmul.f32 %v460, %v460
    %vm462 = vcmask 519168
    %v463 = vsel %vm462, %v461, 0.0
    %464 = vadd.xlane.f32.xlu0 %v463
    %v465 = vpop.xlane.xlu0 %464
    %v466 = vrsqrt.pop %v465
    %v467 = vmul.f32 %v465, %v466
    %vm468 = vcmp.eq.f32.partialorder %v465, inf
    %v469 = vsel %vm468, %v465, %v467
    %vm470 = vcmp.eq.f32.partialorder %v465, 0.0
    %v471 = vand.u32 %v465, 2147483648
    %v472 = vsel %vm470, %v471, %v469
    %v473 = vmax.f32 %v472, 1e-12
    %v474 = vrcp.pop %v473
    %v475 = vmul.f32 %v460, %v474
    %v476 = vld [vmem:[%s2] sm:$0xff]
    %478 = vset.pattern.permute.xlu0 0
    %479 = vperm.xlu0 %478, %v476
    %v480 = vpop.permute.xlu0 %479
    %v490 = vlaneseq
    %v491 = vshrl.u32 %v490, 7
    %v492 = vsub.s32 0, %v491
    %v493 = vrot.slane %v210, %v492
    %v494 = vlaneseq
    %v495 = vshrl.u32 %v494, 7
    %v496 = vsub.s32 0, %v495
    %v497 = vrot.slane %v214, %v496
    %v498 = vlaneseq
    %v499 = vshrl.u32 %v498, 7
    %v500 = vsub.s32 0, %v499
    %v501 = vrot.slane %v218, %v500
    %v502 = vlaneseq
    %v503 = vshrl.u32 %v502, 7
    %v504 = vsub.s32 0, %v503
    %v505 = vrot.slane %v222, %v504
    %v506 = vlaneseq
    %v507 = vshrl.u32 %v506, 7
    %v508 = vsub.s32 0, %v507
    %v509 = vrot.slane %v226, %v508
    %v510 = vlaneseq
    %v511 = vshrl.u32 %v510, 7
    %v512 = vsub.s32 0, %v511
    %v513 = vrot.slane %v230, %v512
    %v514 = vlaneseq
    %v515 = vshrl.u32 %v514, 7
    %v516 = vsub.s32 0, %v515
    %v517 = vrot.slane %v234, %v516
    %v518 = vlaneseq
    %v519 = vshrl.u32 %v518, 7
    %v520 = vsub.s32 0, %v519
    %v521 = vrot.slane %v238, %v520
    %v522 = vmul.f32 %v480, %v493
    %v523 = vmul.f32 %v480, %v497
    %v524 = vmul.f32 %v480, %v501
    %v525 = vmul.f32 %v480, %v505
    %v526 = vmul.f32 %v480, %v509
    %v527 = vmul.f32 %v480, %v513
    %v528 = vmul.f32 %v480, %v517
    %v529 = vmul.f32 %v480, %v521
    %v530 = vadd.f32 %v522, 0.0
    %v531 = vadd.f32 %v523, 0.0
    %v532 = vadd.f32 %v524, 0.0
    %v533 = vadd.f32 %v525, 0.0
    %v534 = vadd.f32 %v526, 0.0
    %v535 = vadd.f32 %v527, 0.0
    %v536 = vadd.f32 %v528, 0.0
    %v537 = vadd.f32 %v529, 0.0
    %s538 = scalar_lea.vmem %s2, 8
    %v539 = vld [vmem:[%s538] sm:$0xff]
    %541 = vset.pattern.permute.xlu0 0
    %542 = vperm.xlu0 %541, %v539
    %v543 = vpop.permute.xlu0 %542
    %v553 = vlaneseq
    %v554 = vshrl.u32 %v553, 7
    %v555 = vsub.s32 1, %v554
    %v556 = vrot.slane %v97, %v555
    %v557 = vlaneseq
    %v558 = vshrl.u32 %v557, 7
    %v559 = vsub.s32 1, %v558
    %v560 = vrot.slane %v101, %v559
    %v561 = vlaneseq
    %v562 = vshrl.u32 %v561, 7
    %v563 = vsub.s32 1, %v562
    %v564 = vrot.slane %v105, %v563
    %v565 = vlaneseq
    %v566 = vshrl.u32 %v565, 7
    %v567 = vsub.s32 1, %v566
    %v568 = vrot.slane %v109, %v567
    %v569 = vlaneseq
    %v570 = vshrl.u32 %v569, 7
    %v571 = vsub.s32 1, %v570
    %v572 = vrot.slane %v113, %v571
    %v573 = vlaneseq
    %v574 = vshrl.u32 %v573, 7
    %v575 = vsub.s32 1, %v574
    %v576 = vrot.slane %v117, %v575
    %v577 = vlaneseq
    %v578 = vshrl.u32 %v577, 7
    %v579 = vsub.s32 1, %v578
    %v580 = vrot.slane %v121, %v579
    %v581 = vlaneseq
    %v582 = vshrl.u32 %v581, 7
    %v583 = vsub.s32 1, %v582
    %v584 = vrot.slane %v125, %v583
    %v585 = vmul.f32 %v543, %v556
    %v586 = vmul.f32 %v543, %v560
    %v587 = vmul.f32 %v543, %v564
    %v588 = vmul.f32 %v543, %v568
    %v589 = vmul.f32 %v543, %v572
    %v590 = vmul.f32 %v543, %v576
    %v591 = vmul.f32 %v543, %v580
    %v592 = vmul.f32 %v543, %v584
    %v593 = vadd.f32 %v530, %v585
    %v594 = vadd.f32 %v531, %v586
    %v595 = vadd.f32 %v532, %v587
    %v596 = vadd.f32 %v533, %v588
    %v597 = vadd.f32 %v534, %v589
    %v598 = vadd.f32 %v535, %v590
    %v599 = vadd.f32 %v536, %v591
    %v600 = vadd.f32 %v537, %v592
    %s601 = scalar_lea.vmem %s2, 16
    %v602 = vld [vmem:[%s601] sm:$0xff]
    %604 = vset.pattern.permute.xlu0 0
    %605 = vperm.xlu0 %604, %v602
    %v606 = vpop.permute.xlu0 %605
    %v616 = vlaneseq
    %v617 = vshrl.u32 %v616, 7
    %v618 = vsub.s32 2, %v617
    %v619 = vrot.slane %v353, %v618
    %v620 = vlaneseq
    %v621 = vshrl.u32 %v620, 7
    %v622 = vsub.s32 2, %v621
    %v623 = vrot.slane %v357, %v622
    %v624 = vlaneseq
    %v625 = vshrl.u32 %v624, 7
    %v626 = vsub.s32 2, %v625
    %v627 = vrot.slane %v361, %v626
    %v628 = vlaneseq
    %v629 = vshrl.u32 %v628, 7
    %v630 = vsub.s32 2, %v629
    %v631 = vrot.slane %v365, %v630
    %v632 = vlaneseq
    %v633 = vshrl.u32 %v632, 7
    %v634 = vsub.s32 2, %v633
    %v635 = vrot.slane %v369, %v634
    %v636 = vlaneseq
    %v637 = vshrl.u32 %v636, 7
    %v638 = vsub.s32 2, %v637
    %v639 = vrot.slane %v373, %v638
    %v640 = vlaneseq
    %v641 = vshrl.u32 %v640, 7
    %v642 = vsub.s32 2, %v641
    %v643 = vrot.slane %v377, %v642
    %v644 = vlaneseq
    %v645 = vshrl.u32 %v644, 7
    %v646 = vsub.s32 2, %v645
    %v647 = vrot.slane %v381, %v646
    %v648 = vmul.f32 %v606, %v619
    %v649 = vmul.f32 %v606, %v623
    %v650 = vmul.f32 %v606, %v627
    %v651 = vmul.f32 %v606, %v631
    %v652 = vmul.f32 %v606, %v635
    %v653 = vmul.f32 %v606, %v639
    %v654 = vmul.f32 %v606, %v643
    %v655 = vmul.f32 %v606, %v647
    %v656 = vadd.f32 %v593, %v648
    %v657 = vadd.f32 %v594, %v649
    %v658 = vadd.f32 %v595, %v650
    %v659 = vadd.f32 %v596, %v651
    %v660 = vadd.f32 %v597, %v652
    %v661 = vadd.f32 %v598, %v653
    %v662 = vadd.f32 %v599, %v654
    %v663 = vadd.f32 %v600, %v655
    %v664 = vmul.f32 %v656, 0.35355338
    %v665 = vmul.f32 %v657, 0.35355338
    %v666 = vmul.f32 %v658, 0.35355338
    %v667 = vmul.f32 %v659, 0.35355338
    %v668 = vpack.c.bf16 %v664, %v664
    %v669 = vpack.c.bf16 %v665, %v665
    %v670 = vpack.c.bf16 %v666, %v666
    %v671 = vpack.c.bf16 %v667, %v667
    %v672 = vpack.c.bf16 %v660, %v660
    %v673 = vpack.c.bf16 %v661, %v661
    %v674 = vpack.c.bf16 %v662, %v662
    %v675 = vpack.c.bf16 %v663, %v663
    %676 = vxpose.xlu0.c.b16.start [1/8] %v668, 128
    %677 = vxpose.xlu0.c.b16.cont [2/8] 0, 128
    %678 = vxpose.xlu0.c.b16.cont [3/8] 0, 128
    %679 = vxpose.xlu0.c.b16.cont [4/8] 0, 128
    %680 = vxpose.xlu0.c.b16.cont [5/8] 0, 128
    %681 = vxpose.xlu0.c.b16.cont [6/8] 0, 128
    %682 = vxpose.xlu0.c.b16.cont [7/8] 0, 128
    %683 = vxpose.xlu0.c.b16.end [8/8] 0, 128
    %v684 = vpop.trf.xlu0
    %v685 = vpop.trf.xlu0
    %v686 = vpop.trf.xlu0
    %v687 = vpop.trf.xlu0
    %v688 = vpop.trf.xlu0
    %v689 = vpop.trf.xlu0
    %v690 = vpop.trf.xlu0
    %v691 = vpop.trf.xlu0
    %692 = vxpose.xlu0.c.b16.start [1/8] %v669, 128
    %693 = vxpose.xlu0.c.b16.cont [2/8] 0, 128
    %694 = vxpose.xlu0.c.b16.cont [3/8] 0, 128
    %695 = vxpose.xlu0.c.b16.cont [4/8] 0, 128
    %696 = vxpose.xlu0.c.b16.cont [5/8] 0, 128
    %697 = vxpose.xlu0.c.b16.cont [6/8] 0, 128
    %698 = vxpose.xlu0.c.b16.cont [7/8] 0, 128
    %699 = vxpose.xlu0.c.b16.end [8/8] 0, 128
    %v700 = vpop.trf.xlu0
    %v701 = vpop.trf.xlu0
    %v702 = vpop.trf.xlu0
    %v703 = vpop.trf.xlu0
    %v704 = vpop.trf.xlu0
    %v705 = vpop.trf.xlu0
    %v706 = vpop.trf.xlu0
    %v707 = vpop.trf.xlu0
    %vm708 = vcmask 64512
    %v710 = vsel %vm708, %v684, 0
    %v713 = vsel %vm708, %v685, 0
    %v716 = vsel %vm708, %v686, 0
    %v719 = vsel %vm708, %v687, 0
    %v722 = vsel %vm708, %v688, 0
    %v725 = vsel %vm708, %v689, 0
    %v728 = vsel %vm708, %v690, 0
    %v731 = vsel %vm708, %v691, 0
    %v734 = vsel %vm708, %v700, 0
    %v737 = vsel %vm708, %v701, 0
    %v740 = vsel %vm708, %v702, 0
    %v743 = vsel %vm708, %v703, 0
    %v746 = vsel %vm708, %v704, 0
    %v749 = vsel %vm708, %v705, 0
    %v752 = vsel %vm708, %v706, 0
    %v755 = vsel %vm708, %v707, 0
    %vm757 = vcmask 1043456
    %v759 = vsel %vm757, %v672, 0
    %v762 = vsel %vm757, %v673, 0
    %764 = vmatprep.subr.bf16.mxu0 %v762
    %765 = vmatpush1.bf16.msra.mxu0 %v759
    %766 = vmatprep.subr.bf16.mxu0 0
    %767 = vmatpush1.bf16.msra.mxu0 0
    %768 = vmatprep.subr.bf16.mxu0 0
    %769 = vmatpush1.bf16.msra.mxu0 0
    %770 = vmatprep.subr.bf16.mxu0 0
    %771 = vmatpush1.bf16.msra.mxu0 0
    %772 = vmatprep.subr.bf16.mxu0 0
    %773 = vmatpush1.bf16.msra.mxu0 0
    %774 = vmatprep.subr.bf16.mxu0 0
    %775 = vmatpush1.bf16.msra.mxu0 0
    %776 = vmatprep.subr.bf16.mxu0 0
    %777 = vmatpush1.bf16.msra.mxu0 0
    %778 = vmatprep.subr.bf16.mxu0 0
    %779 = vmatpush1.bf16.msra.mxu0 0
    %780 = vmatprep.subr.bf16.mxu0 0
    %781 = vmatpush1.bf16.msra.mxu0 0
    %782 = vmatprep.subr.bf16.mxu0 0
    %783 = vmatpush1.bf16.msra.mxu0 0
    %784 = vmatprep.subr.bf16.mxu0 0
    %785 = vmatpush1.bf16.msra.mxu0 0
    %786 = vmatprep.subr.bf16.mxu0 0
    %787 = vmatpush1.bf16.msra.mxu0 0
    %788 = vmatprep.subr.bf16.mxu0 0
    %789 = vmatpush1.bf16.msra.mxu0 0
    %790 = vmatprep.subr.bf16.mxu0 0
    %791 = vmatpush1.bf16.msra.mxu0 0
    %792 = vmatprep.subr.bf16.mxu0 0
    %793 = vmatpush1.bf16.msra.mxu0 0
    %794 = vmatprep.subr.bf16.mxu0 0
    %795 = vmatpush1.bf16.msra.mxu0 0
    %796 = vmatprep.mubr.bf16.mxu0 0
    %797 = vmatmul.mubr.bf16.gmra.mrb[0].mxu0 %v710
    %v798 = vpop.f32.mrb[0].mxu0
    %v799 = vadd.f32 0.0, %v798
    %v800 = vpop.f32.mrb[0].mxu0
    %v801 = vadd.f32 0.0, %v800
    %v802 = vpop.f32.mrb[0].mxu0
    %v803 = vadd.f32 0.0, %v802
    %v804 = vpop.f32.mrb[0].mxu0
    %v805 = vadd.f32 0.0, %v804
    %806 = vmatprep.mubr.bf16.mxu0 0
    %807 = vmatmul.mubr.bf16.gmra.mrb[0].mxu0 %v713
    %v808 = vpop.f32.mrb[0].mxu0
    %v809 = vadd.f32 0.0, %v808
    %v810 = vpop.f32.mrb[0].mxu0
    %v811 = vadd.f32 0.0, %v810
    %v812 = vpop.f32.mrb[0].mxu0
    %v813 = vadd.f32 0.0, %v812
    %v814 = vpop.f32.mrb[0].mxu0
    %v815 = vadd.f32 0.0, %v814
    %816 = vmatprep.mubr.bf16.mxu0 0
    %817 = vmatmul.mubr.bf16.gmra.mrb[0].mxu0 %v716
    %v818 = vpop.f32.mrb[0].mxu0
    %v819 = vadd.f32 0.0, %v818
    %v820 = vpop.f32.mrb[0].mxu0
    %v821 = vadd.f32 0.0, %v820
    %v822 = vpop.f32.mrb[0].mxu0
    %v823 = vadd.f32 0.0, %v822
    %v824 = vpop.f32.mrb[0].mxu0
    %v825 = vadd.f32 0.0, %v824
    %826 = vmatprep.mubr.bf16.mxu0 0
    %827 = vmatmul.mubr.bf16.gmra.mrb[0].mxu0 %v719
    %v828 = vpop.f32.mrb[0].mxu0
    %v829 = vadd.f32 0.0, %v828
    %v830 = vpop.f32.mrb[0].mxu0
    %v831 = vadd.f32 0.0, %v830
    %v832 = vpop.f32.mrb[0].mxu0
    %v833 = vadd.f32 0.0, %v832
    %v834 = vpop.f32.mrb[0].mxu0
    %v835 = vadd.f32 0.0, %v834
    %836 = vmatprep.mubr.bf16.mxu0 0
    %837 = vmatmul.mubr.bf16.gmra.mrb[0].mxu0 %v722
    %v838 = vpop.f32.mrb[0].mxu0
    %v839 = vadd.f32 0.0, %v838
    %v840 = vpop.f32.mrb[0].mxu0
    %v841 = vadd.f32 0.0, %v840
    %v842 = vpop.f32.mrb[0].mxu0
    %v843 = vadd.f32 0.0, %v842
    %v844 = vpop.f32.mrb[0].mxu0
    %v845 = vadd.f32 0.0, %v844
    %846 = vmatprep.mubr.bf16.mxu0 0
    %847 = vmatmul.mubr.bf16.gmra.mrb[0].mxu0 %v725
    %v848 = vpop.f32.mrb[0].mxu0
    %v849 = vadd.f32 0.0, %v848
    %v850 = vpop.f32.mrb[0].mxu0
    %v851 = vadd.f32 0.0, %v850
    %v852 = vpop.f32.mrb[0].mxu0
    %v853 = vadd.f32 0.0, %v852
    %v854 = vpop.f32.mrb[0].mxu0
    %v855 = vadd.f32 0.0, %v854
    %856 = vmatprep.mubr.bf16.mxu0 0
    %857 = vmatmul.mubr.bf16.gmra.mrb[0].mxu0 %v728
    %v858 = vpop.f32.mrb[0].mxu0
    %v859 = vadd.f32 0.0, %v858
    %v860 = vpop.f32.mrb[0].mxu0
    %v861 = vadd.f32 0.0, %v860
    %v862 = vpop.f32.mrb[0].mxu0
    %v863 = vadd.f32 0.0, %v862
    %v864 = vpop.f32.mrb[0].mxu0
    %v865 = vadd.f32 0.0, %v864
    %866 = vmatprep.mubr.bf16.mxu0 0
    %867 = vmatmul.mubr.bf16.gmra.mrb[0].mxu0 %v731
    %v868 = vpop.f32.mrb[0].mxu0
    %v869 = vadd.f32 0.0, %v868
    %v870 = vpop.f32.mrb[0].mxu0
    %v871 = vadd.f32 0.0, %v870
    %v872 = vpop.f32.mrb[0].mxu0
    %v873 = vadd.f32 0.0, %v872
    %v874 = vpop.f32.mrb[0].mxu0
    %v875 = vadd.f32 0.0, %v874
    %876 = vmatprep.mubr.bf16.mxu0 0
    %877 = vmatmul.mubr.bf16.gmra.mrb[0].mxu0 %v734
    %v878 = vpop.f32.mrb[0].mxu0
    %v879 = vadd.f32 0.0, %v878
    %v880 = vpop.f32.mrb[0].mxu0
    %v881 = vadd.f32 0.0, %v880
    %v882 = vpop.f32.mrb[0].mxu0
    %v883 = vadd.f32 0.0, %v882
    %v884 = vpop.f32.mrb[0].mxu0
    %v885 = vadd.f32 0.0, %v884
    %886 = vmatprep.mubr.bf16.mxu0 0
    %887 = vmatmul.mubr.bf16.gmra.mrb[0].mxu0 %v737
    %v888 = vpop.f32.mrb[0].mxu0
    %v889 = vadd.f32 0.0, %v888
    %v890 = vpop.f32.mrb[0].mxu0
    %v891 = vadd.f32 0.0, %v890
    %v892 = vpop.f32.mrb[0].mxu0
    %v893 = vadd.f32 0.0, %v892
    %v894 = vpop.f32.mrb[0].mxu0
    %v895 = vadd.f32 0.0, %v894
    %896 = vmatprep.mubr.bf16.mxu0 0
    %897 = vmatmul.mubr.bf16.gmra.mrb[0].mxu0 %v740
    %v898 = vpop.f32.mrb[0].mxu0
    %v899 = vadd.f32 0.0, %v898
    %v900 = vpop.f32.mrb[0].mxu0
    %v901 = vadd.f32 0.0, %v900
    %v902 = vpop.f32.mrb[0].mxu0
    %v903 = vadd.f32 0.0, %v902
    %v904 = vpop.f32.mrb[0].mxu0
    %v905 = vadd.f32 0.0, %v904
    %906 = vmatprep.mubr.bf16.mxu0 0
    %907 = vmatmul.mubr.bf16.gmra.mrb[0].mxu0 %v743
    %v908 = vpop.f32.mrb[0].mxu0
    %v909 = vadd.f32 0.0, %v908
    %v910 = vpop.f32.mrb[0].mxu0
    %v911 = vadd.f32 0.0, %v910
    %v912 = vpop.f32.mrb[0].mxu0
    %v913 = vadd.f32 0.0, %v912
    %v914 = vpop.f32.mrb[0].mxu0
    %v915 = vadd.f32 0.0, %v914
    %916 = vmatprep.mubr.bf16.mxu0 0
    %917 = vmatmul.mubr.bf16.gmra.mrb[0].mxu0 %v746
    %v918 = vpop.f32.mrb[0].mxu0
    %v919 = vadd.f32 0.0, %v918
    %v920 = vpop.f32.mrb[0].mxu0
    %v921 = vadd.f32 0.0, %v920
    %v922 = vpop.f32.mrb[0].mxu0
    %v923 = vadd.f32 0.0, %v922
    %v924 = vpop.f32.mrb[0].mxu0
    %v925 = vadd.f32 0.0, %v924
    %926 = vmatprep.mubr.bf16.mxu0 0
    %927 = vmatmul.mubr.bf16.gmra.mrb[0].mxu0 %v749
    %v928 = vpop.f32.mrb[0].mxu0
    %v929 = vadd.f32 0.0, %v928
    %v930 = vpop.f32.mrb[0].mxu0
    %v931 = vadd.f32 0.0, %v930
    %v932 = vpop.f32.mrb[0].mxu0
    %v933 = vadd.f32 0.0, %v932
    %v934 = vpop.f32.mrb[0].mxu0
    %v935 = vadd.f32 0.0, %v934
    %936 = vmatprep.mubr.bf16.mxu0 0
    %937 = vmatmul.mubr.bf16.gmra.mrb[0].mxu0 %v752
    %v938 = vpop.f32.mrb[0].mxu0
    %v939 = vadd.f32 0.0, %v938
    %v940 = vpop.f32.mrb[0].mxu0
    %v941 = vadd.f32 0.0, %v940
    %v942 = vpop.f32.mrb[0].mxu0
    %v943 = vadd.f32 0.0, %v942
    %v944 = vpop.f32.mrb[0].mxu0
    %v945 = vadd.f32 0.0, %v944
    %946 = vmatprep.mubr.bf16.mxu0 0
    %947 = vmatmul.mubr.bf16.gmra.mrb[0].mxu0 %v755
    %v948 = vpop.f32.mrb[0].mxu0
    %v949 = vadd.f32 0.0, %v948
    %v950 = vpop.f32.mrb[0].mxu0
    %v951 = vadd.f32 0.0, %v950
    %v952 = vpop.f32.mrb[0].mxu0
    %v953 = vadd.f32 0.0, %v952
    %v954 = vpop.f32.mrb[0].mxu0
    %v955 = vadd.f32 0.0, %v954
    %956 = vdwg.mxu0
    %957 = vxpose.xlu0.c.b16.start [1/8] %v670, 128
    %958 = vxpose.xlu0.c.b16.cont [2/8] 0, 128
    %959 = vxpose.xlu0.c.b16.cont [3/8] 0, 128
    %960 = vxpose.xlu0.c.b16.cont [4/8] 0, 128
    %961 = vxpose.xlu0.c.b16.cont [5/8] 0, 128
    %962 = vxpose.xlu0.c.b16.cont [6/8] 0, 128
    %963 = vxpose.xlu0.c.b16.cont [7/8] 0, 128
    %964 = vxpose.xlu0.c.b16.end [8/8] 0, 128
    %v965 = vpop.trf.xlu0
    %v966 = vpop.trf.xlu0
    %v967 = vpop.trf.xlu0
    %v968 = vpop.trf.xlu0
    %v969 = vpop.trf.xlu0
    %v970 = vpop.trf.xlu0
    %v971 = vpop.trf.xlu0
    %v972 = vpop.trf.xlu0
    %973 = vxpose.xlu0.c.b16.start [1/8] %v671, 128
    %974 = vxpose.xlu0.c.b16.cont [2/8] 0, 128
    %975 = vxpose.xlu0.c.b16.cont [3/8] 0, 128
    %976 = vxpose.xlu0.c.b16.cont [4/8] 0, 128
    %977 = vxpose.xlu0.c.b16.cont [5/8] 0, 128
    %978 = vxpose.xlu0.c.b16.cont [6/8] 0, 128
    %979 = vxpose.xlu0.c.b16.cont [7/8] 0, 128
    %980 = vxpose.xlu0.c.b16.end [8/8] 0, 128
    %v981 = vpop.trf.xlu0
    %v982 = vpop.trf.xlu0
    %v983 = vpop.trf.xlu0
    %v984 = vpop.trf.xlu0
    %v985 = vpop.trf.xlu0
    %v986 = vpop.trf.xlu0
    %v987 = vpop.trf.xlu0
    %v988 = vpop.trf.xlu0
    %v990 = vsel %vm708, %v965, 0
    %v993 = vsel %vm708, %v966, 0
    %v996 = vsel %vm708, %v967, 0
    %v999 = vsel %vm708, %v968, 0
    %v1002 = vsel %vm708, %v969, 0
    %v1005 = vsel %vm708, %v970, 0
    %v1008 = vsel %vm708, %v971, 0
    %v1011 = vsel %vm708, %v972, 0
    %v1014 = vsel %vm708, %v981, 0
    %v1017 = vsel %vm708, %v982, 0
    %v1020 = vsel %vm708, %v983, 0
    %v1023 = vsel %vm708, %v984, 0
    %v1026 = vsel %vm708, %v985, 0
    %v1029 = vsel %vm708, %v986, 0
    %v1032 = vsel %vm708, %v987, 0
    %v1035 = vsel %vm708, %v988, 0
    %v1038 = vsel %vm757, %v674, 0
    %v1041 = vsel %vm757, %v675, 0
    %1043 = vmatprep.subr.bf16.mxu0 %v1041
    %1044 = vmatpush1.bf16.msra.mxu0 %v1038
    %1045 = vmatprep.subr.bf16.mxu0 0
    %1046 = vmatpush1.bf16.msra.mxu0 0
    %1047 = vmatprep.subr.bf16.mxu0 0
    %1048 = vmatpush1.bf16.msra.mxu0 0
    %1049 = vmatprep.subr.bf16.mxu0 0
    %1050 = vmatpush1.bf16.msra.mxu0 0
    %1051 = vmatprep.subr.bf16.mxu0 0
    %1052 = vmatpush1.bf16.msra.mxu0 0
    %1053 = vmatprep.subr.bf16.mxu0 0
    %1054 = vmatpush1.bf16.msra.mxu0 0
    %1055 = vmatprep.subr.bf16.mxu0 0
    %1056 = vmatpush1.bf16.msra.mxu0 0
    %1057 = vmatprep.subr.bf16.mxu0 0
    %1058 = vmatpush1.bf16.msra.mxu0 0
    %1059 = vmatprep.subr.bf16.mxu0 0
    %1060 = vmatpush1.bf16.msra.mxu0 0
    %1061 = vmatprep.subr.bf16.mxu0 0
    %1062 = vmatpush1.bf16.msra.mxu0 0
    %1063 = vmatprep.subr.bf16.mxu0 0
    %1064 = vmatpush1.bf16.msra.mxu0 0
    %1065 = vmatprep.subr.bf16.mxu0 0
    %1066 = vmatpush1.bf16.msra.mxu0 0
    %1067 = vmatprep.subr.bf16.mxu0 0
    %1068 = vmatpush1.bf16.msra.mxu0 0
    %1069 = vmatprep.subr.bf16.mxu0 0
    %1070 = vmatpush1.bf16.msra.mxu0 0
    %1071 = vmatprep.subr.bf16.mxu0 0
    %1072 = vmatpush1.bf16.msra.mxu0 0
    %1073 = vmatprep.subr.bf16.mxu0 0
    %1074 = vmatpush1.bf16.msra.mxu0 0
    %1075 = vmatprep.mubr.bf16.mxu0 0
    %1076 = vmatmul.mubr.bf16.gmra.mrb[0].mxu0 %v990
    %v1077 = vpop.f32.mrb[0].mxu0
    %v1078 = vadd.f32 0.0, %v1077
    %v1079 = vpop.f32.mrb[0].mxu0
    %v1080 = vadd.f32 0.0, %v1079
    %v1081 = vpop.f32.mrb[0].mxu0
    %v1082 = vadd.f32 0.0, %v1081
    %v1083 = vpop.f32.mrb[0].mxu0
    %v1084 = vadd.f32 0.0, %v1083
    %1085 = vmatprep.mubr.bf16.mxu0 0
    %1086 = vmatmul.mubr.bf16.gmra.mrb[0].mxu0 %v993
    %v1087 = vpop.f32.mrb[0].mxu0
    %v1088 = vadd.f32 0.0, %v1087
    %v1089 = vpop.f32.mrb[0].mxu0
    %v1090 = vadd.f32 0.0, %v1089
    %v1091 = vpop.f32.mrb[0].mxu0
    %v1092 = vadd.f32 0.0, %v1091
    %v1093 = vpop.f32.mrb[0].mxu0
    %v1094 = vadd.f32 0.0, %v1093
    %1095 = vmatprep.mubr.bf16.mxu0 0
    %1096 = vmatmul.mubr.bf16.gmra.mrb[0].mxu0 %v996
    %v1097 = vpop.f32.mrb[0].mxu0
    %v1098 = vadd.f32 0.0, %v1097
    %v1099 = vpop.f32.mrb[0].mxu0
    %v1100 = vadd.f32 0.0, %v1099
    %v1101 = vpop.f32.mrb[0].mxu0
    %v1102 = vadd.f32 0.0, %v1101
    %v1103 = vpop.f32.mrb[0].mxu0
    %v1104 = vadd.f32 0.0, %v1103
    %1105 = vmatprep.mubr.bf16.mxu0 0
    %1106 = vmatmul.mubr.bf16.gmra.mrb[0].mxu0 %v999
    %v1107 = vpop.f32.mrb[0].mxu0
    %v1108 = vadd.f32 0.0, %v1107
    %v1109 = vpop.f32.mrb[0].mxu0
    %v1110 = vadd.f32 0.0, %v1109
    %v1111 = vpop.f32.mrb[0].mxu0
    %v1112 = vadd.f32 0.0, %v1111
    %v1113 = vpop.f32.mrb[0].mxu0
    %v1114 = vadd.f32 0.0, %v1113
    %1115 = vmatprep.mubr.bf16.mxu0 0
    %1116 = vmatmul.mubr.bf16.gmra.mrb[0].mxu0 %v1002
    %v1117 = vpop.f32.mrb[0].mxu0
    %v1118 = vadd.f32 0.0, %v1117
    %v1119 = vpop.f32.mrb[0].mxu0
    %v1120 = vadd.f32 0.0, %v1119
    %v1121 = vpop.f32.mrb[0].mxu0
    %v1122 = vadd.f32 0.0, %v1121
    %v1123 = vpop.f32.mrb[0].mxu0
    %v1124 = vadd.f32 0.0, %v1123
    %1125 = vmatprep.mubr.bf16.mxu0 0
    %1126 = vmatmul.mubr.bf16.gmra.mrb[0].mxu0 %v1005
    %v1127 = vpop.f32.mrb[0].mxu0
    %v1128 = vadd.f32 0.0, %v1127
    %v1129 = vpop.f32.mrb[0].mxu0
    %v1130 = vadd.f32 0.0, %v1129
    %v1131 = vpop.f32.mrb[0].mxu0
    %v1132 = vadd.f32 0.0, %v1131
    %v1133 = vpop.f32.mrb[0].mxu0
    %v1134 = vadd.f32 0.0, %v1133
    %1135 = vmatprep.mubr.bf16.mxu0 0
    %1136 = vmatmul.mubr.bf16.gmra.mrb[0].mxu0 %v1008
    %v1137 = vpop.f32.mrb[0].mxu0
    %v1138 = vadd.f32 0.0, %v1137
    %v1139 = vpop.f32.mrb[0].mxu0
    %v1140 = vadd.f32 0.0, %v1139
    %v1141 = vpop.f32.mrb[0].mxu0
    %v1142 = vadd.f32 0.0, %v1141
    %v1143 = vpop.f32.mrb[0].mxu0
    %v1144 = vadd.f32 0.0, %v1143
    %1145 = vmatprep.mubr.bf16.mxu0 0
    %1146 = vmatmul.mubr.bf16.gmra.mrb[0].mxu0 %v1011
    %v1147 = vpop.f32.mrb[0].mxu0
    %v1148 = vadd.f32 0.0, %v1147
    %v1149 = vpop.f32.mrb[0].mxu0
    %v1150 = vadd.f32 0.0, %v1149
    %v1151 = vpop.f32.mrb[0].mxu0
    %v1152 = vadd.f32 0.0, %v1151
    %v1153 = vpop.f32.mrb[0].mxu0
    %v1154 = vadd.f32 0.0, %v1153
    %1155 = vmatprep.mubr.bf16.mxu0 0
    %1156 = vmatmul.mubr.bf16.gmra.mrb[0].mxu0 %v1014
    %v1157 = vpop.f32.mrb[0].mxu0
    %v1158 = vadd.f32 0.0, %v1157
    %v1159 = vpop.f32.mrb[0].mxu0
    %v1160 = vadd.f32 0.0, %v1159
    %v1161 = vpop.f32.mrb[0].mxu0
    %v1162 = vadd.f32 0.0, %v1161
    %v1163 = vpop.f32.mrb[0].mxu0
    %v1164 = vadd.f32 0.0, %v1163
    %1165 = vmatprep.mubr.bf16.mxu0 0
    %1166 = vmatmul.mubr.bf16.gmra.mrb[0].mxu0 %v1017
    %v1167 = vpop.f32.mrb[0].mxu0
    %v1168 = vadd.f32 0.0, %v1167
    %v1169 = vpop.f32.mrb[0].mxu0
    %v1170 = vadd.f32 0.0, %v1169
    %v1171 = vpop.f32.mrb[0].mxu0
    %v1172 = vadd.f32 0.0, %v1171
    %v1173 = vpop.f32.mrb[0].mxu0
    %v1174 = vadd.f32 0.0, %v1173
    %1175 = vmatprep.mubr.bf16.mxu0 0
    %1176 = vmatmul.mubr.bf16.gmra.mrb[0].mxu0 %v1020
    %v1177 = vpop.f32.mrb[0].mxu0
    %v1178 = vadd.f32 0.0, %v1177
    %v1179 = vpop.f32.mrb[0].mxu0
    %v1180 = vadd.f32 0.0, %v1179
    %v1181 = vpop.f32.mrb[0].mxu0
    %v1182 = vadd.f32 0.0, %v1181
    %v1183 = vpop.f32.mrb[0].mxu0
    %v1184 = vadd.f32 0.0, %v1183
    %1185 = vmatprep.mubr.bf16.mxu0 0
    %1186 = vmatmul.mubr.bf16.gmra.mrb[0].mxu0 %v1023
    %v1187 = vpop.f32.mrb[0].mxu0
    %v1188 = vadd.f32 0.0, %v1187
    %v1189 = vpop.f32.mrb[0].mxu0
    %v1190 = vadd.f32 0.0, %v1189
    %v1191 = vpop.f32.mrb[0].mxu0
    %v1192 = vadd.f32 0.0, %v1191
    %v1193 = vpop.f32.mrb[0].mxu0
    %v1194 = vadd.f32 0.0, %v1193
    %1195 = vmatprep.mubr.bf16.mxu0 0
    %1196 = vmatmul.mubr.bf16.gmra.mrb[0].mxu0 %v1026
    %v1197 = vpop.f32.mrb[0].mxu0
    %v1198 = vadd.f32 0.0, %v1197
    %v1199 = vpop.f32.mrb[0].mxu0
    %v1200 = vadd.f32 0.0, %v1199
    %v1201 = vpop.f32.mrb[0].mxu0
    %v1202 = vadd.f32 0.0, %v1201
    %v1203 = vpop.f32.mrb[0].mxu0
    %v1204 = vadd.f32 0.0, %v1203
    %1205 = vmatprep.mubr.bf16.mxu0 0
    %1206 = vmatmul.mubr.bf16.gmra.mrb[0].mxu0 %v1029
    %v1207 = vpop.f32.mrb[0].mxu0
    %v1208 = vadd.f32 0.0, %v1207
    %v1209 = vpop.f32.mrb[0].mxu0
    %v1210 = vadd.f32 0.0, %v1209
    %v1211 = vpop.f32.mrb[0].mxu0
    %v1212 = vadd.f32 0.0, %v1211
    %v1213 = vpop.f32.mrb[0].mxu0
    %v1214 = vadd.f32 0.0, %v1213
    %1215 = vmatprep.mubr.bf16.mxu0 0
    %1216 = vmatmul.mubr.bf16.gmra.mrb[0].mxu0 %v1032
    %v1217 = vpop.f32.mrb[0].mxu0
    %v1218 = vadd.f32 0.0, %v1217
    %v1219 = vpop.f32.mrb[0].mxu0
    %v1220 = vadd.f32 0.0, %v1219
    %v1221 = vpop.f32.mrb[0].mxu0
    %v1222 = vadd.f32 0.0, %v1221
    %v1223 = vpop.f32.mrb[0].mxu0
    %v1224 = vadd.f32 0.0, %v1223
    %1225 = vmatprep.mubr.bf16.mxu0 0
    %1226 = vmatmul.mubr.bf16.gmra.mrb[0].mxu0 %v1035
    %v1227 = vpop.f32.mrb[0].mxu0
    %v1228 = vadd.f32 0.0, %v1227
    %v1229 = vpop.f32.mrb[0].mxu0
    %v1230 = vadd.f32 0.0, %v1229
    %v1231 = vpop.f32.mrb[0].mxu0
    %v1232 = vadd.f32 0.0, %v1231
    %v1233 = vpop.f32.mrb[0].mxu0
    %v1234 = vadd.f32 0.0, %v1233
    %1235 = vdwg.mxu0
    %v1236 = vmax.f32 %v799, %v801
    %1237 = vmax.xlane.f32.xlu0 %v1236
    %v1238 = vpop.xlane.xlu0 %1237
    %v1239 = vmax.f32 %v803, %v805
    %1240 = vmax.xlane.f32.xlu0 %v1239
    %v1241 = vpop.xlane.xlu0 %1240
    %v1242 = vmax.f32 %v809, %v811
    %1243 = vmax.xlane.f32.xlu0 %v1242
    %v1244 = vpop.xlane.xlu0 %1243
    %v1245 = vmax.f32 %v813, %v815
    %1246 = vmax.xlane.f32.xlu0 %v1245
    %v1247 = vpop.xlane.xlu0 %1246
    %v1248 = vmax.f32 %v819, %v821
    %1249 = vmax.xlane.f32.xlu0 %v1248
    %v1250 = vpop.xlane.xlu0 %1249
    %v1251 = vmax.f32 %v823, %v825
    %1252 = vmax.xlane.f32.xlu0 %v1251
    %v1253 = vpop.xlane.xlu0 %1252
    %v1254 = vmax.f32 %v829, %v831
    %1255 = vmax.xlane.f32.xlu0 %v1254
    %v1256 = vpop.xlane.xlu0 %1255
    %v1257 = vmax.f32 %v833, %v835
    %1258 = vmax.xlane.f32.xlu0 %v1257
    %v1259 = vpop.xlane.xlu0 %1258
    %v1260 = vmax.f32 %v839, %v841
    %1261 = vmax.xlane.f32.xlu0 %v1260
    %v1262 = vpop.xlane.xlu0 %1261
    %v1263 = vmax.f32 %v843, %v845
    %1264 = vmax.xlane.f32.xlu0 %v1263
    %v1265 = vpop.xlane.xlu0 %1264
    %v1266 = vmax.f32 %v849, %v851
    %1267 = vmax.xlane.f32.xlu0 %v1266
    %v1268 = vpop.xlane.xlu0 %1267
    %v1269 = vmax.f32 %v853, %v855
    %1270 = vmax.xlane.f32.xlu0 %v1269
    %v1271 = vpop.xlane.xlu0 %1270
    %v1272 = vmax.f32 %v859, %v861
    %1273 = vmax.xlane.f32.xlu0 %v1272
    %v1274 = vpop.xlane.xlu0 %1273
    %v1275 = vmax.f32 %v863, %v865
    %1276 = vmax.xlane.f32.xlu0 %v1275
    %v1277 = vpop.xlane.xlu0 %1276
    %v1278 = vmax.f32 %v869, %v871
    %1279 = vmax.xlane.f32.xlu0 %v1278
    %v1280 = vpop.xlane.xlu0 %1279
    %v1281 = vmax.f32 %v873, %v875
    %1282 = vmax.xlane.f32.xlu0 %v1281
    %v1283 = vpop.xlane.xlu0 %1282
    %v1284 = vmax.f32 %v879, %v881
    %1285 = vmax.xlane.f32.xlu0 %v1284
    %v1286 = vpop.xlane.xlu0 %1285
    %v1287 = vmax.f32 %v883, %v885
    %1288 = vmax.xlane.f32.xlu0 %v1287
    %v1289 = vpop.xlane.xlu0 %1288
    %v1290 = vmax.f32 %v889, %v891
    %1291 = vmax.xlane.f32.xlu0 %v1290
    %v1292 = vpop.xlane.xlu0 %1291
    %v1293 = vmax.f32 %v893, %v895
    %1294 = vmax.xlane.f32.xlu0 %v1293
    %v1295 = vpop.xlane.xlu0 %1294
    %v1296 = vmax.f32 %v899, %v901
    %1297 = vmax.xlane.f32.xlu0 %v1296
    %v1298 = vpop.xlane.xlu0 %1297
    %v1299 = vmax.f32 %v903, %v905
    %1300 = vmax.xlane.f32.xlu0 %v1299
    %v1301 = vpop.xlane.xlu0 %1300
    %v1302 = vmax.f32 %v909, %v911
    %1303 = vmax.xlane.f32.xlu0 %v1302
    %v1304 = vpop.xlane.xlu0 %1303
    %v1305 = vmax.f32 %v913, %v915
    %1306 = vmax.xlane.f32.xlu0 %v1305
    %v1307 = vpop.xlane.xlu0 %1306
    %v1308 = vmax.f32 %v919, %v921
    %1309 = vmax.xlane.f32.xlu0 %v1308
    %v1310 = vpop.xlane.xlu0 %1309
    %v1311 = vmax.f32 %v923, %v925
    %1312 = vmax.xlane.f32.xlu0 %v1311
    %v1313 = vpop.xlane.xlu0 %1312
    %v1314 = vmax.f32 %v929, %v931
    %1315 = vmax.xlane.f32.xlu0 %v1314
    %v1316 = vpop.xlane.xlu0 %1315
    %v1317 = vmax.f32 %v933, %v935
    %1318 = vmax.xlane.f32.xlu0 %v1317
    %v1319 = vpop.xlane.xlu0 %1318
    %v1320 = vmax.f32 %v939, %v941
    %1321 = vmax.xlane.f32.xlu0 %v1320
    %v1322 = vpop.xlane.xlu0 %1321
    %v1323 = vmax.f32 %v943, %v945
    %1324 = vmax.xlane.f32.xlu0 %v1323
    %v1325 = vpop.xlane.xlu0 %1324
    %v1326 = vmax.f32 %v949, %v951
    %1327 = vmax.xlane.f32.xlu0 %v1326
    %v1328 = vpop.xlane.xlu0 %1327
    %v1329 = vmax.f32 %v953, %v955
    %1330 = vmax.xlane.f32.xlu0 %v1329
    %v1331 = vpop.xlane.xlu0 %1330
    %v1332 = vmax.f32 %v1078, %v1080
    %1333 = vmax.xlane.f32.xlu0 %v1332
    %v1334 = vpop.xlane.xlu0 %1333
    %v1335 = vmax.f32 %v1082, %v1084
    %1336 = vmax.xlane.f32.xlu0 %v1335
    %v1337 = vpop.xlane.xlu0 %1336
    %v1338 = vmax.f32 %v1088, %v1090
    %1339 = vmax.xlane.f32.xlu0 %v1338
    %v1340 = vpop.xlane.xlu0 %1339
    %v1341 = vmax.f32 %v1092, %v1094
    %1342 = vmax.xlane.f32.xlu0 %v1341
    %v1343 = vpop.xlane.xlu0 %1342
    %v1344 = vmax.f32 %v1098, %v1100
    %1345 = vmax.xlane.f32.xlu0 %v1344
    %v1346 = vpop.xlane.xlu0 %1345
    %v1347 = vmax.f32 %v1102, %v1104
    %1348 = vmax.xlane.f32.xlu0 %v1347
    %v1349 = vpop.xlane.xlu0 %1348
    %v1350 = vmax.f32 %v1108, %v1110
    %1351 = vmax.xlane.f32.xlu0 %v1350
    %v1352 = vpop.xlane.xlu0 %1351
    %v1353 = vmax.f32 %v1112, %v1114
    %1354 = vmax.xlane.f32.xlu0 %v1353
    %v1355 = vpop.xlane.xlu0 %1354
    %v1356 = vmax.f32 %v1118, %v1120
    %1357 = vmax.xlane.f32.xlu0 %v1356
    %v1358 = vpop.xlane.xlu0 %1357
    %v1359 = vmax.f32 %v1122, %v1124
    %1360 = vmax.xlane.f32.xlu0 %v1359
    %v1361 = vpop.xlane.xlu0 %1360
    %v1362 = vmax.f32 %v1128, %v1130
    %1363 = vmax.xlane.f32.xlu0 %v1362
    %v1364 = vpop.xlane.xlu0 %1363
    %v1365 = vmax.f32 %v1132, %v1134
    %1366 = vmax.xlane.f32.xlu0 %v1365
    %v1367 = vpop.xlane.xlu0 %1366
    %v1368 = vmax.f32 %v1138, %v1140
    %1369 = vmax.xlane.f32.xlu0 %v1368
    %v1370 = vpop.xlane.xlu0 %1369
    %v1371 = vmax.f32 %v1142, %v1144
    %1372 = vmax.xlane.f32.xlu0 %v1371
    %v1373 = vpop.xlane.xlu0 %1372
    %v1374 = vmax.f32 %v1148, %v1150
    %1375 = vmax.xlane.f32.xlu0 %v1374
    %v1376 = vpop.xlane.xlu0 %1375
    %v1377 = vmax.f32 %v1152, %v1154
    %1378 = vmax.xlane.f32.xlu0 %v1377
    %v1379 = vpop.xlane.xlu0 %1378
    %v1380 = vmax.f32 %v1158, %v1160
    %1381 = vmax.xlane.f32.xlu0 %v1380
    %v1382 = vpop.xlane.xlu0 %1381
    %v1383 = vmax.f32 %v1162, %v1164
    %1384 = vmax.xlane.f32.xlu0 %v1383
    %v1385 = vpop.xlane.xlu0 %1384
    %v1386 = vmax.f32 %v1168, %v1170
    %1387 = vmax.xlane.f32.xlu0 %v1386
    %v1388 = vpop.xlane.xlu0 %1387
    %v1389 = vmax.f32 %v1172, %v1174
    %1390 = vmax.xlane.f32.xlu0 %v1389
    %v1391 = vpop.xlane.xlu0 %1390
    %v1392 = vmax.f32 %v1178, %v1180
    %1393 = vmax.xlane.f32.xlu0 %v1392
    %v1394 = vpop.xlane.xlu0 %1393
    %v1395 = vmax.f32 %v1182, %v1184
    %1396 = vmax.xlane.f32.xlu0 %v1395
    %v1397 = vpop.xlane.xlu0 %1396
    %v1398 = vmax.f32 %v1188, %v1190
    %1399 = vmax.xlane.f32.xlu0 %v1398
    %v1400 = vpop.xlane.xlu0 %1399
    %v1401 = vmax.f32 %v1192, %v1194
    %1402 = vmax.xlane.f32.xlu0 %v1401
    %v1403 = vpop.xlane.xlu0 %1402
    %v1404 = vmax.f32 %v1198, %v1200
    %1405 = vmax.xlane.f32.xlu0 %v1404
    %v1406 = vpop.xlane.xlu0 %1405
    %v1407 = vmax.f32 %v1202, %v1204
    %1408 = vmax.xlane.f32.xlu0 %v1407
    %v1409 = vpop.xlane.xlu0 %1408
    %v1410 = vmax.f32 %v1208, %v1210
    %1411 = vmax.xlane.f32.xlu0 %v1410
    %v1412 = vpop.xlane.xlu0 %1411
    %v1413 = vmax.f32 %v1212, %v1214
    %1414 = vmax.xlane.f32.xlu0 %v1413
    %v1415 = vpop.xlane.xlu0 %1414
    %v1416 = vmax.f32 %v1218, %v1220
    %1417 = vmax.xlane.f32.xlu0 %v1416
    %v1418 = vpop.xlane.xlu0 %1417
    %v1419 = vmax.f32 %v1222, %v1224
    %1420 = vmax.xlane.f32.xlu0 %v1419
    %v1421 = vpop.xlane.xlu0 %1420
    %v1422 = vmax.f32 %v1228, %v1230
    %1423 = vmax.xlane.f32.xlu0 %v1422
    %v1424 = vpop.xlane.xlu0 %1423
    %v1425 = vmax.f32 %v1232, %v1234
    %1426 = vmax.xlane.f32.xlu0 %v1425
    %v1427 = vpop.xlane.xlu0 %1426
    %v1428 = vsub.f32 %v799, %v1238
    %v1429 = vsub.f32 %v801, %v1238
    %v1430 = vsub.f32 %v803, %v1241
    %v1431 = vsub.f32 %v805, %v1241
    %v1432 = vsub.f32 %v809, %v1244
    %v1433 = vsub.f32 %v811, %v1244
    %v1434 = vsub.f32 %v813, %v1247
    %v1435 = vsub.f32 %v815, %v1247
    %v1436 = vsub.f32 %v819, %v1250
    %v1437 = vsub.f32 %v821, %v1250
    %v1438 = vsub.f32 %v823, %v1253
    %v1439 = vsub.f32 %v825, %v1253
    %v1440 = vsub.f32 %v829, %v1256
    %v1441 = vsub.f32 %v831, %v1256
    %v1442 = vsub.f32 %v833, %v1259
    %v1443 = vsub.f32 %v835, %v1259
    %v1444 = vsub.f32 %v839, %v1262
    %v1445 = vsub.f32 %v841, %v1262
    %v1446 = vsub.f32 %v843, %v1265
    %v1447 = vsub.f32 %v845, %v1265
    %v1448 = vsub.f32 %v849, %v1268
    %v1449 = vsub.f32 %v851, %v1268
    %v1450 = vsub.f32 %v853, %v1271
    %v1451 = vsub.f32 %v855, %v1271
    %v1452 = vsub.f32 %v859, %v1274
    %v1453 = vsub.f32 %v861, %v1274
    %v1454 = vsub.f32 %v863, %v1277
    %v1455 = vsub.f32 %v865, %v1277
    %v1456 = vsub.f32 %v869, %v1280
    %v1457 = vsub.f32 %v871, %v1280
    %v1458 = vsub.f32 %v873, %v1283
    %v1459 = vsub.f32 %v875, %v1283
    %v1460 = vsub.f32 %v879, %v1286
    %v1461 = vsub.f32 %v881, %v1286
    %v1462 = vsub.f32 %v883, %v1289
    %v1463 = vsub.f32 %v885, %v1289
    %v1464 = vsub.f32 %v889, %v1292
    %v1465 = vsub.f32 %v891, %v1292
    %v1466 = vsub.f32 %v893, %v1295
    %v1467 = vsub.f32 %v895, %v1295
    %v1468 = vsub.f32 %v899, %v1298
    %v1469 = vsub.f32 %v901, %v1298
    %v1470 = vsub.f32 %v903, %v1301
    %v1471 = vsub.f32 %v905, %v1301
    %v1472 = vsub.f32 %v909, %v1304
    %v1473 = vsub.f32 %v911, %v1304
    %v1474 = vsub.f32 %v913, %v1307
    %v1475 = vsub.f32 %v915, %v1307
    %v1476 = vsub.f32 %v919, %v1310
    %v1477 = vsub.f32 %v921, %v1310
    %v1478 = vsub.f32 %v923, %v1313
    %v1479 = vsub.f32 %v925, %v1313
    %v1480 = vsub.f32 %v929, %v1316
    %v1481 = vsub.f32 %v931, %v1316
    %v1482 = vsub.f32 %v933, %v1319
    %v1483 = vsub.f32 %v935, %v1319
    %v1484 = vsub.f32 %v939, %v1322
    %v1485 = vsub.f32 %v941, %v1322
    %v1486 = vsub.f32 %v943, %v1325
    %v1487 = vsub.f32 %v945, %v1325
    %v1488 = vsub.f32 %v949, %v1328
    %v1489 = vsub.f32 %v951, %v1328
    %v1490 = vsub.f32 %v953, %v1331
    %v1491 = vsub.f32 %v955, %v1331
    %v1492 = vsub.f32 %v1078, %v1334
    %v1493 = vsub.f32 %v1080, %v1334
    %v1494 = vsub.f32 %v1082, %v1337
    %v1495 = vsub.f32 %v1084, %v1337
    %v1496 = vsub.f32 %v1088, %v1340
    %v1497 = vsub.f32 %v1090, %v1340
    %v1498 = vsub.f32 %v1092, %v1343
    %v1499 = vsub.f32 %v1094, %v1343
    %v1500 = vsub.f32 %v1098, %v1346
    %v1501 = vsub.f32 %v1100, %v1346
    %v1502 = vsub.f32 %v1102, %v1349
    %v1503 = vsub.f32 %v1104, %v1349
    %v1504 = vsub.f32 %v1108, %v1352
    %v1505 = vsub.f32 %v1110, %v1352
    %v1506 = vsub.f32 %v1112, %v1355
    %v1507 = vsub.f32 %v1114, %v1355
    %v1508 = vsub.f32 %v1118, %v1358
    %v1509 = vsub.f32 %v1120, %v1358
    %v1510 = vsub.f32 %v1122, %v1361
    %v1511 = vsub.f32 %v1124, %v1361
    %v1512 = vsub.f32 %v1128, %v1364
    %v1513 = vsub.f32 %v1130, %v1364
    %v1514 = vsub.f32 %v1132, %v1367
    %v1515 = vsub.f32 %v1134, %v1367
    %v1516 = vsub.f32 %v1138, %v1370
    %v1517 = vsub.f32 %v1140, %v1370
    %v1518 = vsub.f32 %v1142, %v1373
    %v1519 = vsub.f32 %v1144, %v1373
    %v1520 = vsub.f32 %v1148, %v1376
    %v1521 = vsub.f32 %v1150, %v1376
    %v1522 = vsub.f32 %v1152, %v1379
    %v1523 = vsub.f32 %v1154, %v1379
    %v1524 = vsub.f32 %v1158, %v1382
    %v1525 = vsub.f32 %v1160, %v1382
    %v1526 = vsub.f32 %v1162, %v1385
    %v1527 = vsub.f32 %v1164, %v1385
    %v1528 = vsub.f32 %v1168, %v1388
    %v1529 = vsub.f32 %v1170, %v1388
    %v1530 = vsub.f32 %v1172, %v1391
    %v1531 = vsub.f32 %v1174, %v1391
    %v1532 = vsub.f32 %v1178, %v1394
    %v1533 = vsub.f32 %v1180, %v1394
    %v1534 = vsub.f32 %v1182, %v1397
    %v1535 = vsub.f32 %v1184, %v1397
    %v1536 = vsub.f32 %v1188, %v1400
    %v1537 = vsub.f32 %v1190, %v1400
    %v1538 = vsub.f32 %v1192, %v1403
    %v1539 = vsub.f32 %v1194, %v1403
    %v1540 = vsub.f32 %v1198, %v1406
    %v1541 = vsub.f32 %v1200, %v1406
    %v1542 = vsub.f32 %v1202, %v1409
    %v1543 = vsub.f32 %v1204, %v1409
    %v1544 = vsub.f32 %v1208, %v1412
    %v1545 = vsub.f32 %v1210, %v1412
    %v1546 = vsub.f32 %v1212, %v1415
    %v1547 = vsub.f32 %v1214, %v1415
    %v1548 = vsub.f32 %v1218, %v1418
    %v1549 = vsub.f32 %v1220, %v1418
    %v1550 = vsub.f32 %v1222, %v1421
    %v1551 = vsub.f32 %v1224, %v1421
    %v1552 = vsub.f32 %v1228, %v1424
    %v1553 = vsub.f32 %v1230, %v1424
    %v1554 = vsub.f32 %v1232, %v1427
    %v1555 = vsub.f32 %v1234, %v1427
    %v1556 = vmul.f32 %v1428, 1.442695
    %v1557 = vpow.pop %v1556
    %v1558 = vmul.f32 %v1429, 1.442695
    %v1559 = vpow.pop %v1558
    %v1560 = vmul.f32 %v1430, 1.442695
    %v1561 = vpow.pop %v1560
    %v1562 = vmul.f32 %v1431, 1.442695
    %v1563 = vpow.pop %v1562
    %v1564 = vmul.f32 %v1432, 1.442695
    %v1565 = vpow.pop %v1564
    %v1566 = vmul.f32 %v1433, 1.442695
    %v1567 = vpow.pop %v1566
    %v1568 = vmul.f32 %v1434, 1.442695
    %v1569 = vpow.pop %v1568
    %v1570 = vmul.f32 %v1435, 1.442695
    %v1571 = vpow.pop %v1570
    %v1572 = vmul.f32 %v1436, 1.442695
    %v1573 = vpow.pop %v1572
    %v1574 = vmul.f32 %v1437, 1.442695
    %v1575 = vpow.pop %v1574
    %v1576 = vmul.f32 %v1438, 1.442695
    %v1577 = vpow.pop %v1576
    %v1578 = vmul.f32 %v1439, 1.442695
    %v1579 = vpow.pop %v1578
    %v1580 = vmul.f32 %v1440, 1.442695
    %v1581 = vpow.pop %v1580
    %v1582 = vmul.f32 %v1441, 1.442695
    %v1583 = vpow.pop %v1582
    %v1584 = vmul.f32 %v1442, 1.442695
    %v1585 = vpow.pop %v1584
    %v1586 = vmul.f32 %v1443, 1.442695
    %v1587 = vpow.pop %v1586
    %v1588 = vmul.f32 %v1444, 1.442695
    %v1589 = vpow.pop %v1588
    %v1590 = vmul.f32 %v1445, 1.442695
    %v1591 = vpow.pop %v1590
    %v1592 = vmul.f32 %v1446, 1.442695
    %v1593 = vpow.pop %v1592
    %v1594 = vmul.f32 %v1447, 1.442695
    %v1595 = vpow.pop %v1594
    %v1596 = vmul.f32 %v1448, 1.442695
    %v1597 = vpow.pop %v1596
    %v1598 = vmul.f32 %v1449, 1.442695
    %v1599 = vpow.pop %v1598
    %v1600 = vmul.f32 %v1450, 1.442695
    %v1601 = vpow.pop %v1600
    %v1602 = vmul.f32 %v1451, 1.442695
    %v1603 = vpow.pop %v1602
    %v1604 = vmul.f32 %v1452, 1.442695
    %v1605 = vpow.pop %v1604
    %v1606 = vmul.f32 %v1453, 1.442695
    %v1607 = vpow.pop %v1606
    %v1608 = vmul.f32 %v1454, 1.442695
    %v1609 = vpow.pop %v1608
    %v1610 = vmul.f32 %v1455, 1.442695
    %v1611 = vpow.pop %v1610
    %v1612 = vmul.f32 %v1456, 1.442695
    %v1613 = vpow.pop %v1612
    %v1614 = vmul.f32 %v1457, 1.442695
    %v1615 = vpow.pop %v1614
    %v1616 = vmul.f32 %v1458, 1.442695
    %v1617 = vpow.pop %v1616
    %v1618 = vmul.f32 %v1459, 1.442695
    %v1619 = vpow.pop %v1618
    %v1620 = vmul.f32 %v1460, 1.442695
    %v1621 = vpow.pop %v1620
    %v1622 = vmul.f32 %v1461, 1.442695
    %v1623 = vpow.pop %v1622
    %v1624 = vmul.f32 %v1462, 1.442695
    %v1625 = vpow.pop %v1624
    %v1626 = vmul.f32 %v1463, 1.442695
    %v1627 = vpow.pop %v1626
    %v1628 = vmul.f32 %v1464, 1.442695
    %v1629 = vpow.pop %v1628
    %v1630 = vmul.f32 %v1465, 1.442695
    %v1631 = vpow.pop %v1630
    %v1632 = vmul.f32 %v1466, 1.442695
    %v1633 = vpow.pop %v1632
    %v1634 = vmul.f32 %v1467, 1.442695
    %v1635 = vpow.pop %v1634
    %v1636 = vmul.f32 %v1468, 1.442695
    %v1637 = vpow.pop %v1636
    %v1638 = vmul.f32 %v1469, 1.442695
    %v1639 = vpow.pop %v1638
    %v1640 = vmul.f32 %v1470, 1.442695
    %v1641 = vpow.pop %v1640
    %v1642 = vmul.f32 %v1471, 1.442695
    %v1643 = vpow.pop %v1642
    %v1644 = vmul.f32 %v1472, 1.442695
    %v1645 = vpow.pop %v1644
    %v1646 = vmul.f32 %v1473, 1.442695
    %v1647 = vpow.pop %v1646
    %v1648 = vmul.f32 %v1474, 1.442695
    %v1649 = vpow.pop %v1648
    %v1650 = vmul.f32 %v1475, 1.442695
    %v1651 = vpow.pop %v1650
    %v1652 = vmul.f32 %v1476, 1.442695
    %v1653 = vpow.pop %v1652
    %v1654 = vmul.f32 %v1477, 1.442695
    %v1655 = vpow.pop %v1654
    %v1656 = vmul.f32 %v1478, 1.442695
    %v1657 = vpow.pop %v1656
    %v1658 = vmul.f32 %v1479, 1.442695
    %v1659 = vpow.pop %v1658
    %v1660 = vmul.f32 %v1480, 1.442695
    %v1661 = vpow.pop %v1660
    %v1662 = vmul.f32 %v1481, 1.442695
    %v1663 = vpow.pop %v1662
    %v1664 = vmul.f32 %v1482, 1.442695
    %v1665 = vpow.pop %v1664
    %v1666 = vmul.f32 %v1483, 1.442695
    %v1667 = vpow.pop %v1666
    %v1668 = vmul.f32 %v1484, 1.442695
    %v1669 = vpow.pop %v1668
    %v1670 = vmul.f32 %v1485, 1.442695
    %v1671 = vpow.pop %v1670
    %v1672 = vmul.f32 %v1486, 1.442695
    %v1673 = vpow.pop %v1672
    %v1674 = vmul.f32 %v1487, 1.442695
    %v1675 = vpow.pop %v1674
    %v1676 = vmul.f32 %v1488, 1.442695
    %v1677 = vpow.pop %v1676
    %v1678 = vmul.f32 %v1489, 1.442695
    %v1679 = vpow.pop %v1678
    %v1680 = vmul.f32 %v1490, 1.442695
    %v1681 = vpow.pop %v1680
    %v1682 = vmul.f32 %v1491, 1.442695
    %v1683 = vpow.pop %v1682
    %v1684 = vmul.f32 %v1492, 1.442695
    %v1685 = vpow.pop %v1684
    %v1686 = vmul.f32 %v1493, 1.442695
    %v1687 = vpow.pop %v1686
    %v1688 = vmul.f32 %v1494, 1.442695
    %v1689 = vpow.pop %v1688
    %v1690 = vmul.f32 %v1495, 1.442695
    %v1691 = vpow.pop %v1690
    %v1692 = vmul.f32 %v1496, 1.442695
    %v1693 = vpow.pop %v1692
    %v1694 = vmul.f32 %v1497, 1.442695
    %v1695 = vpow.pop %v1694
    %v1696 = vmul.f32 %v1498, 1.442695
    %v1697 = vpow.pop %v1696
    %v1698 = vmul.f32 %v1499, 1.442695
    %v1699 = vpow.pop %v1698
    %v1700 = vmul.f32 %v1500, 1.442695
    %v1701 = vpow.pop %v1700
    %v1702 = vmul.f32 %v1501, 1.442695
    %v1703 = vpow.pop %v1702
    %v1704 = vmul.f32 %v1502, 1.442695
    %v1705 = vpow.pop %v1704
    %v1706 = vmul.f32 %v1503, 1.442695
    %v1707 = vpow.pop %v1706
    %v1708 = vmul.f32 %v1504, 1.442695
    %v1709 = vpow.pop %v1708
    %v1710 = vmul.f32 %v1505, 1.442695
    %v1711 = vpow.pop %v1710
    %v1712 = vmul.f32 %v1506, 1.442695
    %v1713 = vpow.pop %v1712
    %v1714 = vmul.f32 %v1507, 1.442695
    %v1715 = vpow.pop %v1714
    %v1716 = vmul.f32 %v1508, 1.442695
    %v1717 = vpow.pop %v1716
    %v1718 = vmul.f32 %v1509, 1.442695
    %v1719 = vpow.pop %v1718
    %v1720 = vmul.f32 %v1510, 1.442695
    %v1721 = vpow.pop %v1720
    %v1722 = vmul.f32 %v1511, 1.442695
    %v1723 = vpow.pop %v1722
    %v1724 = vmul.f32 %v1512, 1.442695
    %v1725 = vpow.pop %v1724
    %v1726 = vmul.f32 %v1513, 1.442695
    %v1727 = vpow.pop %v1726
    %v1728 = vmul.f32 %v1514, 1.442695
    %v1729 = vpow.pop %v1728
    %v1730 = vmul.f32 %v1515, 1.442695
    %v1731 = vpow.pop %v1730
    %v1732 = vmul.f32 %v1516, 1.442695
    %v1733 = vpow.pop %v1732
    %v1734 = vmul.f32 %v1517, 1.442695
    %v1735 = vpow.pop %v1734
    %v1736 = vmul.f32 %v1518, 1.442695
    %v1737 = vpow.pop %v1736
    %v1738 = vmul.f32 %v1519, 1.442695
    %v1739 = vpow.pop %v1738
    %v1740 = vmul.f32 %v1520, 1.442695
    %v1741 = vpow.pop %v1740
    %v1742 = vmul.f32 %v1521, 1.442695
    %v1743 = vpow.pop %v1742
    %v1744 = vmul.f32 %v1522, 1.442695
    %v1745 = vpow.pop %v1744
    %v1746 = vmul.f32 %v1523, 1.442695
    %v1747 = vpow.pop %v1746
    %v1748 = vmul.f32 %v1524, 1.442695
    %v1749 = vpow.pop %v1748
    %v1750 = vmul.f32 %v1525, 1.442695
    %v1751 = vpow.pop %v1750
    %v1752 = vmul.f32 %v1526, 1.442695
    %v1753 = vpow.pop %v1752
    %v1754 = vmul.f32 %v1527, 1.442695
    %v1755 = vpow.pop %v1754
    %v1756 = vmul.f32 %v1528, 1.442695
    %v1757 = vpow.pop %v1756
    %v1758 = vmul.f32 %v1529, 1.442695
    %v1759 = vpow.pop %v1758
    %v1760 = vmul.f32 %v1530, 1.442695
    %v1761 = vpow.pop %v1760
    %v1762 = vmul.f32 %v1531, 1.442695
    %v1763 = vpow.pop %v1762
    %v1764 = vmul.f32 %v1532, 1.442695
    %v1765 = vpow.pop %v1764
    %v1766 = vmul.f32 %v1533, 1.442695
    %v1767 = vpow.pop %v1766
    %v1768 = vmul.f32 %v1534, 1.442695
    %v1769 = vpow.pop %v1768
    %v1770 = vmul.f32 %v1535, 1.442695
    %v1771 = vpow.pop %v1770
    %v1772 = vmul.f32 %v1536, 1.442695
    %v1773 = vpow.pop %v1772
    %v1774 = vmul.f32 %v1537, 1.442695
    %v1775 = vpow.pop %v1774
    %v1776 = vmul.f32 %v1538, 1.442695
    %v1777 = vpow.pop %v1776
    %v1778 = vmul.f32 %v1539, 1.442695
    %v1779 = vpow.pop %v1778
    %v1780 = vmul.f32 %v1540, 1.442695
    %v1781 = vpow.pop %v1780
    %v1782 = vmul.f32 %v1541, 1.442695
    %v1783 = vpow.pop %v1782
    %v1784 = vmul.f32 %v1542, 1.442695
    %v1785 = vpow.pop %v1784
    %v1786 = vmul.f32 %v1543, 1.442695
    %v1787 = vpow.pop %v1786
    %v1788 = vmul.f32 %v1544, 1.442695
    %v1789 = vpow.pop %v1788
    %v1790 = vmul.f32 %v1545, 1.442695
    %v1791 = vpow.pop %v1790
    %v1792 = vmul.f32 %v1546, 1.442695
    %v1793 = vpow.pop %v1792
    %v1794 = vmul.f32 %v1547, 1.442695
    %v1795 = vpow.pop %v1794
    %v1796 = vmul.f32 %v1548, 1.442695
    %v1797 = vpow.pop %v1796
    %v1798 = vmul.f32 %v1549, 1.442695
    %v1799 = vpow.pop %v1798
    %v1800 = vmul.f32 %v1550, 1.442695
    %v1801 = vpow.pop %v1800
    %v1802 = vmul.f32 %v1551, 1.442695
    %v1803 = vpow.pop %v1802
    %v1804 = vmul.f32 %v1552, 1.442695
    %v1805 = vpow.pop %v1804
    %v1806 = vmul.f32 %v1553, 1.442695
    %v1807 = vpow.pop %v1806
    %v1808 = vmul.f32 %v1554, 1.442695
    %v1809 = vpow.pop %v1808
    %v1810 = vmul.f32 %v1555, 1.442695
    %v1811 = vpow.pop %v1810
    %v1812 = vadd.f32 %v1557, %v1559
    %1813 = vadd.xlane.f32.xlu0 %v1812
    %v1814 = vpop.xlane.xlu0 %1813
    %v1815 = vadd.f32 %v1561, %v1563
    %1816 = vadd.xlane.f32.xlu0 %v1815
    %v1817 = vpop.xlane.xlu0 %1816
    %v1818 = vadd.f32 %v1565, %v1567
    %1819 = vadd.xlane.f32.xlu0 %v1818
    %v1820 = vpop.xlane.xlu0 %1819
    %v1821 = vadd.f32 %v1569, %v1571
    %1822 = vadd.xlane.f32.xlu0 %v1821
    %v1823 = vpop.xlane.xlu0 %1822
    %v1824 = vadd.f32 %v1573, %v1575
    %1825 = vadd.xlane.f32.xlu0 %v1824
    %v1826 = vpop.xlane.xlu0 %1825
    %v1827 = vadd.f32 %v1577, %v1579
    %1828 = vadd.xlane.f32.xlu0 %v1827
    %v1829 = vpop.xlane.xlu0 %1828
    %v1830 = vadd.f32 %v1581, %v1583
    %1831 = vadd.xlane.f32.xlu0 %v1830
    %v1832 = vpop.xlane.xlu0 %1831
    %v1833 = vadd.f32 %v1585, %v1587
    %1834 = vadd.xlane.f32.xlu0 %v1833
    %v1835 = vpop.xlane.xlu0 %1834
    %v1836 = vadd.f32 %v1589, %v1591
    %1837 = vadd.xlane.f32.xlu0 %v1836
    %v1838 = vpop.xlane.xlu0 %1837
    %v1839 = vadd.f32 %v1593, %v1595
    %1840 = vadd.xlane.f32.xlu0 %v1839
    %v1841 = vpop.xlane.xlu0 %1840
    %v1842 = vadd.f32 %v1597, %v1599
    %1843 = vadd.xlane.f32.xlu0 %v1842
    %v1844 = vpop.xlane.xlu0 %1843
    %v1845 = vadd.f32 %v1601, %v1603
    %1846 = vadd.xlane.f32.xlu0 %v1845
    %v1847 = vpop.xlane.xlu0 %1846
    %v1848 = vadd.f32 %v1605, %v1607
    %1849 = vadd.xlane.f32.xlu0 %v1848
    %v1850 = vpop.xlane.xlu0 %1849
    %v1851 = vadd.f32 %v1609, %v1611
    %1852 = vadd.xlane.f32.xlu0 %v1851
    %v1853 = vpop.xlane.xlu0 %1852
    %v1854 = vadd.f32 %v1613, %v1615
    %1855 = vadd.xlane.f32.xlu0 %v1854
    %v1856 = vpop.xlane.xlu0 %1855
    %v1857 = vadd.f32 %v1617, %v1619
    %1858 = vadd.xlane.f32.xlu0 %v1857
    %v1859 = vpop.xlane.xlu0 %1858
    %v1860 = vadd.f32 %v1621, %v1623
    %1861 = vadd.xlane.f32.xlu0 %v1860
    %v1862 = vpop.xlane.xlu0 %1861
    %v1863 = vadd.f32 %v1625, %v1627
    %1864 = vadd.xlane.f32.xlu0 %v1863
    %v1865 = vpop.xlane.xlu0 %1864
    %v1866 = vadd.f32 %v1629, %v1631
    %1867 = vadd.xlane.f32.xlu0 %v1866
    %v1868 = vpop.xlane.xlu0 %1867
    %v1869 = vadd.f32 %v1633, %v1635
    %1870 = vadd.xlane.f32.xlu0 %v1869
    %v1871 = vpop.xlane.xlu0 %1870
    %v1872 = vadd.f32 %v1637, %v1639
    %1873 = vadd.xlane.f32.xlu0 %v1872
    %v1874 = vpop.xlane.xlu0 %1873
    %v1875 = vadd.f32 %v1641, %v1643
    %1876 = vadd.xlane.f32.xlu0 %v1875
    %v1877 = vpop.xlane.xlu0 %1876
    %v1878 = vadd.f32 %v1645, %v1647
    %1879 = vadd.xlane.f32.xlu0 %v1878
    %v1880 = vpop.xlane.xlu0 %1879
    %v1881 = vadd.f32 %v1649, %v1651
    %1882 = vadd.xlane.f32.xlu0 %v1881
    %v1883 = vpop.xlane.xlu0 %1882
    %v1884 = vadd.f32 %v1653, %v1655
    %1885 = vadd.xlane.f32.xlu0 %v1884
    %v1886 = vpop.xlane.xlu0 %1885
    %v1887 = vadd.f32 %v1657, %v1659
    %1888 = vadd.xlane.f32.xlu0 %v1887
    %v1889 = vpop.xlane.xlu0 %1888
    %v1890 = vadd.f32 %v1661, %v1663
    %1891 = vadd.xlane.f32.xlu0 %v1890
    %v1892 = vpop.xlane.xlu0 %1891
    %v1893 = vadd.f32 %v1665, %v1667
    %1894 = vadd.xlane.f32.xlu0 %v1893
    %v1895 = vpop.xlane.xlu0 %1894
    %v1896 = vadd.f32 %v1669, %v1671
    %1897 = vadd.xlane.f32.xlu0 %v1896
    %v1898 = vpop.xlane.xlu0 %1897
    %v1899 = vadd.f32 %v1673, %v1675
    %1900 = vadd.xlane.f32.xlu0 %v1899
    %v1901 = vpop.xlane.xlu0 %1900
    %v1902 = vadd.f32 %v1677, %v1679
    %1903 = vadd.xlane.f32.xlu0 %v1902
    %v1904 = vpop.xlane.xlu0 %1903
    %v1905 = vadd.f32 %v1681, %v1683
    %1906 = vadd.xlane.f32.xlu0 %v1905
    %v1907 = vpop.xlane.xlu0 %1906
    %v1908 = vadd.f32 %v1685, %v1687
    %1909 = vadd.xlane.f32.xlu0 %v1908
    %v1910 = vpop.xlane.xlu0 %1909
    %v1911 = vadd.f32 %v1689, %v1691
    %1912 = vadd.xlane.f32.xlu0 %v1911
    %v1913 = vpop.xlane.xlu0 %1912
    %v1914 = vadd.f32 %v1693, %v1695
    %1915 = vadd.xlane.f32.xlu0 %v1914
    %v1916 = vpop.xlane.xlu0 %1915
    %v1917 = vadd.f32 %v1697, %v1699
    %1918 = vadd.xlane.f32.xlu0 %v1917
    %v1919 = vpop.xlane.xlu0 %1918
    %v1920 = vadd.f32 %v1701, %v1703
    %1921 = vadd.xlane.f32.xlu0 %v1920
    %v1922 = vpop.xlane.xlu0 %1921
    %v1923 = vadd.f32 %v1705, %v1707
    %1924 = vadd.xlane.f32.xlu0 %v1923
    %v1925 = vpop.xlane.xlu0 %1924
    %v1926 = vadd.f32 %v1709, %v1711
    %1927 = vadd.xlane.f32.xlu0 %v1926
    %v1928 = vpop.xlane.xlu0 %1927
    %v1929 = vadd.f32 %v1713, %v1715
    %1930 = vadd.xlane.f32.xlu0 %v1929
    %v1931 = vpop.xlane.xlu0 %1930
    %v1932 = vadd.f32 %v1717, %v1719
    %1933 = vadd.xlane.f32.xlu0 %v1932
    %v1934 = vpop.xlane.xlu0 %1933
    %v1935 = vadd.f32 %v1721, %v1723
    %1936 = vadd.xlane.f32.xlu0 %v1935
    %v1937 = vpop.xlane.xlu0 %1936
    %v1938 = vadd.f32 %v1725, %v1727
    %1939 = vadd.xlane.f32.xlu0 %v1938
    %v1940 = vpop.xlane.xlu0 %1939
    %v1941 = vadd.f32 %v1729, %v1731
    %1942 = vadd.xlane.f32.xlu0 %v1941
    %v1943 = vpop.xlane.xlu0 %1942
    %v1944 = vadd.f32 %v1733, %v1735
    %1945 = vadd.xlane.f32.xlu0 %v1944
    %v1946 = vpop.xlane.xlu0 %1945
    %v1947 = vadd.f32 %v1737, %v1739
    %1948 = vadd.xlane.f32.xlu0 %v1947
    %v1949 = vpop.xlane.xlu0 %1948
    %v1950 = vadd.f32 %v1741, %v1743
    %1951 = vadd.xlane.f32.xlu0 %v1950
    %v1952 = vpop.xlane.xlu0 %1951
    %v1953 = vadd.f32 %v1745, %v1747
    %1954 = vadd.xlane.f32.xlu0 %v1953
    %v1955 = vpop.xlane.xlu0 %1954
    %v1956 = vadd.f32 %v1749, %v1751
    %1957 = vadd.xlane.f32.xlu0 %v1956
    %v1958 = vpop.xlane.xlu0 %1957
    %v1959 = vadd.f32 %v1753, %v1755
    %1960 = vadd.xlane.f32.xlu0 %v1959
    %v1961 = vpop.xlane.xlu0 %1960
    %v1962 = vadd.f32 %v1757, %v1759
    %1963 = vadd.xlane.f32.xlu0 %v1962
    %v1964 = vpop.xlane.xlu0 %1963
    %v1965 = vadd.f32 %v1761, %v1763
    %1966 = vadd.xlane.f32.xlu0 %v1965
    %v1967 = vpop.xlane.xlu0 %1966
    %v1968 = vadd.f32 %v1765, %v1767
    %1969 = vadd.xlane.f32.xlu0 %v1968
    %v1970 = vpop.xlane.xlu0 %1969
    %v1971 = vadd.f32 %v1769, %v1771
    %1972 = vadd.xlane.f32.xlu0 %v1971
    %v1973 = vpop.xlane.xlu0 %1972
    %v1974 = vadd.f32 %v1773, %v1775
    %1975 = vadd.xlane.f32.xlu0 %v1974
    %v1976 = vpop.xlane.xlu0 %1975
    %v1977 = vadd.f32 %v1777, %v1779
    %1978 = vadd.xlane.f32.xlu0 %v1977
    %v1979 = vpop.xlane.xlu0 %1978
    %v1980 = vadd.f32 %v1781, %v1783
    %1981 = vadd.xlane.f32.xlu0 %v1980
    %v1982 = vpop.xlane.xlu0 %1981
    %v1983 = vadd.f32 %v1785, %v1787
    %1984 = vadd.xlane.f32.xlu0 %v1983
    %v1985 = vpop.xlane.xlu0 %1984
    %v1986 = vadd.f32 %v1789, %v1791
    %1987 = vadd.xlane.f32.xlu0 %v1986
    %v1988 = vpop.xlane.xlu0 %1987
    %v1989 = vadd.f32 %v1793, %v1795
    %1990 = vadd.xlane.f32.xlu0 %v1989
    %v1991 = vpop.xlane.xlu0 %1990
    %v1992 = vadd.f32 %v1797, %v1799
    %1993 = vadd.xlane.f32.xlu0 %v1992
    %v1994 = vpop.xlane.xlu0 %1993
    %v1995 = vadd.f32 %v1801, %v1803
    %1996 = vadd.xlane.f32.xlu0 %v1995
    %v1997 = vpop.xlane.xlu0 %1996
    %v1998 = vadd.f32 %v1805, %v1807
    %1999 = vadd.xlane.f32.xlu0 %v1998
    %v2000 = vpop.xlane.xlu0 %1999
    %v2001 = vadd.f32 %v1809, %v1811
    %2002 = vadd.xlane.f32.xlu0 %v2001
    %v2003 = vpop.xlane.xlu0 %2002
    %v2004 = vrcp.pop %v1814
    %v2005 = vmul.f32 %v1557, %v2004
    %v2006 = vmul.f32 %v1559, %v2004
    %v2007 = vrcp.pop %v1817
    %v2008 = vmul.f32 %v1561, %v2007
    %v2009 = vmul.f32 %v1563, %v2007
    %v2010 = vrcp.pop %v1820
    %v2011 = vmul.f32 %v1565, %v2010
    %v2012 = vmul.f32 %v1567, %v2010
    %v2013 = vrcp.pop %v1823
    %v2014 = vmul.f32 %v1569, %v2013
    %v2015 = vmul.f32 %v1571, %v2013
    %v2016 = vrcp.pop %v1826
    %v2017 = vmul.f32 %v1573, %v2016
    %v2018 = vmul.f32 %v1575, %v2016
    %v2019 = vrcp.pop %v1829
    %v2020 = vmul.f32 %v1577, %v2019
    %v2021 = vmul.f32 %v1579, %v2019
    %v2022 = vrcp.pop %v1832
    %v2023 = vmul.f32 %v1581, %v2022
    %v2024 = vmul.f32 %v1583, %v2022
    %v2025 = vrcp.pop %v1835
    %v2026 = vmul.f32 %v1585, %v2025
    %v2027 = vmul.f32 %v1587, %v2025
    %v2028 = vrcp.pop %v1838
    %v2029 = vmul.f32 %v1589, %v2028
    %v2030 = vmul.f32 %v1591, %v2028
    %v2031 = vrcp.pop %v1841
    %v2032 = vmul.f32 %v1593, %v2031
    %v2033 = vmul.f32 %v1595, %v2031
    %v2034 = vrcp.pop %v1844
    %v2035 = vmul.f32 %v1597, %v2034
    %v2036 = vmul.f32 %v1599, %v2034
    %v2037 = vrcp.pop %v1847
    %v2038 = vmul.f32 %v1601, %v2037
    %v2039 = vmul.f32 %v1603, %v2037
    %v2040 = vrcp.pop %v1850
    %v2041 = vmul.f32 %v1605, %v2040
    %v2042 = vmul.f32 %v1607, %v2040
    %v2043 = vrcp.pop %v1853
    %v2044 = vmul.f32 %v1609, %v2043
    %v2045 = vmul.f32 %v1611, %v2043
    %v2046 = vrcp.pop %v1856
    %v2047 = vmul.f32 %v1613, %v2046
    %v2048 = vmul.f32 %v1615, %v2046
    %v2049 = vrcp.pop %v1859
    %v2050 = vmul.f32 %v1617, %v2049
    %v2051 = vmul.f32 %v1619, %v2049
    %v2052 = vrcp.pop %v1862
    %v2053 = vmul.f32 %v1621, %v2052
    %v2054 = vmul.f32 %v1623, %v2052
    %v2055 = vrcp.pop %v1865
    %v2056 = vmul.f32 %v1625, %v2055
    %v2057 = vmul.f32 %v1627, %v2055
    %v2058 = vrcp.pop %v1868
    %v2059 = vmul.f32 %v1629, %v2058
    %v2060 = vmul.f32 %v1631, %v2058
    %v2061 = vrcp.pop %v1871
    %v2062 = vmul.f32 %v1633, %v2061
    %v2063 = vmul.f32 %v1635, %v2061
    %v2064 = vrcp.pop %v1874
    %v2065 = vmul.f32 %v1637, %v2064
    %v2066 = vmul.f32 %v1639, %v2064
    %v2067 = vrcp.pop %v1877
    %v2068 = vmul.f32 %v1641, %v2067
    %v2069 = vmul.f32 %v1643, %v2067
    %v2070 = vrcp.pop %v1880
    %v2071 = vmul.f32 %v1645, %v2070
    %v2072 = vmul.f32 %v1647, %v2070
    %v2073 = vrcp.pop %v1883
    %v2074 = vmul.f32 %v1649, %v2073
    %v2075 = vmul.f32 %v1651, %v2073
    %v2076 = vrcp.pop %v1886
    %v2077 = vmul.f32 %v1653, %v2076
    %v2078 = vmul.f32 %v1655, %v2076
    %v2079 = vrcp.pop %v1889
    %v2080 = vmul.f32 %v1657, %v2079
    %v2081 = vmul.f32 %v1659, %v2079
    %v2082 = vrcp.pop %v1892
    %v2083 = vmul.f32 %v1661, %v2082
    %v2084 = vmul.f32 %v1663, %v2082
    %v2085 = vrcp.pop %v1895
    %v2086 = vmul.f32 %v1665, %v2085
    %v2087 = vmul.f32 %v1667, %v2085
    %v2088 = vrcp.pop %v1898
    %v2089 = vmul.f32 %v1669, %v2088
    %v2090 = vmul.f32 %v1671, %v2088
    %v2091 = vrcp.pop %v1901
    %v2092 = vmul.f32 %v1673, %v2091
    %v2093 = vmul.f32 %v1675, %v2091
    %v2094 = vrcp.pop %v1904
    %v2095 = vmul.f32 %v1677, %v2094
    %v2096 = vmul.f32 %v1679, %v2094
    %v2097 = vrcp.pop %v1907
    %v2098 = vmul.f32 %v1681, %v2097
    %v2099 = vmul.f32 %v1683, %v2097
    %v2100 = vrcp.pop %v1910
    %v2101 = vmul.f32 %v1685, %v2100
    %v2102 = vmul.f32 %v1687, %v2100
    %v2103 = vrcp.pop %v1913
    %v2104 = vmul.f32 %v1689, %v2103
    %v2105 = vmul.f32 %v1691, %v2103
    %v2106 = vrcp.pop %v1916
    %v2107 = vmul.f32 %v1693, %v2106
    %v2108 = vmul.f32 %v1695, %v2106
    %v2109 = vrcp.pop %v1919
    %v2110 = vmul.f32 %v1697, %v2109
    %v2111 = vmul.f32 %v1699, %v2109
    %v2112 = vrcp.pop %v1922
    %v2113 = vmul.f32 %v1701, %v2112
    %v2114 = vmul.f32 %v1703, %v2112
    %v2115 = vrcp.pop %v1925
    %v2116 = vmul.f32 %v1705, %v2115
    %v2117 = vmul.f32 %v1707, %v2115
    %v2118 = vrcp.pop %v1928
    %v2119 = vmul.f32 %v1709, %v2118
    %v2120 = vmul.f32 %v1711, %v2118
    %v2121 = vrcp.pop %v1931
    %v2122 = vmul.f32 %v1713, %v2121
    %v2123 = vmul.f32 %v1715, %v2121
    %v2124 = vrcp.pop %v1934
    %v2125 = vmul.f32 %v1717, %v2124
    %v2126 = vmul.f32 %v1719, %v2124
    %v2127 = vrcp.pop %v1937
    %v2128 = vmul.f32 %v1721, %v2127
    %v2129 = vmul.f32 %v1723, %v2127
    %v2130 = vrcp.pop %v1940
    %v2131 = vmul.f32 %v1725, %v2130
    %v2132 = vmul.f32 %v1727, %v2130
    %v2133 = vrcp.pop %v1943
    %v2134 = vmul.f32 %v1729, %v2133
    %v2135 = vmul.f32 %v1731, %v2133
    %v2136 = vrcp.pop %v1946
    %v2137 = vmul.f32 %v1733, %v2136
    %v2138 = vmul.f32 %v1735, %v2136
    %v2139 = vrcp.pop %v1949
    %v2140 = vmul.f32 %v1737, %v2139
    %v2141 = vmul.f32 %v1739, %v2139
    %v2142 = vrcp.pop %v1952
    %v2143 = vmul.f32 %v1741, %v2142
    %v2144 = vmul.f32 %v1743, %v2142
    %v2145 = vrcp.pop %v1955
    %v2146 = vmul.f32 %v1745, %v2145
    %v2147 = vmul.f32 %v1747, %v2145
    %v2148 = vrcp.pop %v1958
    %v2149 = vmul.f32 %v1749, %v2148
    %v2150 = vmul.f32 %v1751, %v2148
    %v2151 = vrcp.pop %v1961
    %v2152 = vmul.f32 %v1753, %v2151
    %v2153 = vmul.f32 %v1755, %v2151
    %v2154 = vrcp.pop %v1964
    %v2155 = vmul.f32 %v1757, %v2154
    %v2156 = vmul.f32 %v1759, %v2154
    %v2157 = vrcp.pop %v1967
    %v2158 = vmul.f32 %v1761, %v2157
    %v2159 = vmul.f32 %v1763, %v2157
    %v2160 = vrcp.pop %v1970
    %v2161 = vmul.f32 %v1765, %v2160
    %v2162 = vmul.f32 %v1767, %v2160
    %v2163 = vrcp.pop %v1973
    %v2164 = vmul.f32 %v1769, %v2163
    %v2165 = vmul.f32 %v1771, %v2163
    %v2166 = vrcp.pop %v1976
    %v2167 = vmul.f32 %v1773, %v2166
    %v2168 = vmul.f32 %v1775, %v2166
    %v2169 = vrcp.pop %v1979
    %v2170 = vmul.f32 %v1777, %v2169
    %v2171 = vmul.f32 %v1779, %v2169
    %v2172 = vrcp.pop %v1982
    %v2173 = vmul.f32 %v1781, %v2172
    %v2174 = vmul.f32 %v1783, %v2172
    %v2175 = vrcp.pop %v1985
    %v2176 = vmul.f32 %v1785, %v2175
    %v2177 = vmul.f32 %v1787, %v2175
    %v2178 = vrcp.pop %v1988
    %v2179 = vmul.f32 %v1789, %v2178
    %v2180 = vmul.f32 %v1791, %v2178
    %v2181 = vrcp.pop %v1991
    %v2182 = vmul.f32 %v1793, %v2181
    %v2183 = vmul.f32 %v1795, %v2181
    %v2184 = vrcp.pop %v1994
    %v2185 = vmul.f32 %v1797, %v2184
    %v2186 = vmul.f32 %v1799, %v2184
    %v2187 = vrcp.pop %v1997
    %v2188 = vmul.f32 %v1801, %v2187
    %v2189 = vmul.f32 %v1803, %v2187
    %v2190 = vrcp.pop %v2000
    %v2191 = vmul.f32 %v1805, %v2190
    %v2192 = vmul.f32 %v1807, %v2190
    %v2193 = vrcp.pop %v2003
    %v2194 = vmul.f32 %v1809, %v2193
    %v2195 = vmul.f32 %v1811, %v2193
    %2196 = vst [vmem:[#allocation2] sm:$0xff] %v2005
    %2197 = vst [vmem:[#allocation2 + $0x8] sm:$0xff] %v2006
    %2198 = vst [vmem:[#allocation2 + $0x10] sm:$0xff] %v2008
    %2199 = vst [vmem:[#allocation2 + $0x18] sm:$0xff] %v2009
    %2200 = vst [vmem:[#allocation2 + $0x20] sm:$0xff] %v2011
    %2201 = vst [vmem:[#allocation2 + $0x28] sm:$0xff] %v2012
    %2202 = vst [vmem:[#allocation2 + $0x30] sm:$0xff] %v2014
    %2203 = vst [vmem:[#allocation2 + $0x38] sm:$0xff] %v2015
    %2204 = vst [vmem:[#allocation2 + $0x40] sm:$0xff] %v2017
    %2205 = vst [vmem:[#allocation2 + $0x48] sm:$0xff] %v2018
    %2206 = vst [vmem:[#allocation2 + $0x50] sm:$0xff] %v2020
    %2207 = vst [vmem:[#allocation2 + $0x58] sm:$0xff] %v2021
    %2208 = vst [vmem:[#allocation2 + $0x60] sm:$0xff] %v2023
    %2209 = vst [vmem:[#allocation2 + $0x68] sm:$0xff] %v2024
    %2210 = vst [vmem:[#allocation2 + $0x70] sm:$0xff] %v2026
    %2211 = vst [vmem:[#allocation2 + $0x78] sm:$0xff] %v2027
    %2212 = vst [vmem:[#allocation2 + $0x80] sm:$0xff] %v2029
    %2213 = vst [vmem:[#allocation2 + $0x88] sm:$0xff] %v2030
    %2214 = vst [vmem:[#allocation2 + $0x90] sm:$0xff] %v2032
    %2215 = vst [vmem:[#allocation2 + $0x98] sm:$0xff] %v2033
    %2216 = vst [vmem:[#allocation2 + $0xa0] sm:$0xff] %v2035
    %2217 = vst [vmem:[#allocation2 + $0xa8] sm:$0xff] %v2036
    %2218 = vst [vmem:[#allocation2 + $0xb0] sm:$0xff] %v2038
    %2219 = vst [vmem:[#allocation2 + $0xb8] sm:$0xff] %v2039
    %2220 = vst [vmem:[#allocation2 + $0xc0] sm:$0xff] %v2041
    %2221 = vst [vmem:[#allocation2 + $0xc8] sm:$0xff] %v2042
    %2222 = vst [vmem:[#allocation2 + $0xd0] sm:$0xff] %v2044
    %2223 = vst [vmem:[#allocation2 + $0xd8] sm:$0xff] %v2045
    %2224 = vst [vmem:[#allocation2 + $0xe0] sm:$0xff] %v2047
    %2225 = vst [vmem:[#allocation2 + $0xe8] sm:$0xff] %v2048
    %2226 = vst [vmem:[#allocation2 + $0xf0] sm:$0xff] %v2050
    %2227 = vst [vmem:[#allocation2 + $0xf8] sm:$0xff] %v2051
    %2228 = vst [vmem:[#allocation2 + $0x100] sm:$0xff] %v2053
    %2229 = vst [vmem:[#allocation2 + $0x108] sm:$0xff] %v2054
    %2230 = vst [vmem:[#allocation2 + $0x110] sm:$0xff] %v2056
    %2231 = vst [vmem:[#allocation2 + $0x118] sm:$0xff] %v2057
    %2232 = vst [vmem:[#allocation2 + $0x120] sm:$0xff] %v2059
    %2233 = vst [vmem:[#allocation2 + $0x128] sm:$0xff] %v2060
    %2234 = vst [vmem:[#allocation2 + $0x130] sm:$0xff] %v2062
    %2235 = vst [vmem:[#allocation2 + $0x138] sm:$0xff] %v2063
    %2236 = vst [vmem:[#allocation2 + $0x140] sm:$0xff] %v2065
    %2237 = vst [vmem:[#allocation2 + $0x148] sm:$0xff] %v2066
    %2238 = vst [vmem:[#allocation2 + $0x150] sm:$0xff] %v2068
    %2239 = vst [vmem:[#allocation2 + $0x158] sm:$0xff] %v2069
    %2240 = vst [vmem:[#allocation2 + $0x160] sm:$0xff] %v2071
    %2241 = vst [vmem:[#allocation2 + $0x168] sm:$0xff] %v2072
    %2242 = vst [vmem:[#allocation2 + $0x170] sm:$0xff] %v2074
    %2243 = vst [vmem:[#allocation2 + $0x178] sm:$0xff] %v2075
    %2244 = vst [vmem:[#allocation2 + $0x180] sm:$0xff] %v2077
    %2245 = vst [vmem:[#allocation2 + $0x188] sm:$0xff] %v2078
    %2246 = vst [vmem:[#allocation2 + $0x190] sm:$0xff] %v2080
    %2247 = vst [vmem:[#allocation2 + $0x198] sm:$0xff] %v2081
    %2248 = vst [vmem:[#allocation2 + $0x1a0] sm:$0xff] %v2083
    %2249 = vst [vmem:[#allocation2 + $0x1a8] sm:$0xff] %v2084
    %2250 = vst [vmem:[#allocation2 + $0x1b0] sm:$0xff] %v2086
    %2251 = vst [vmem:[#allocation2 + $0x1b8] sm:$0xff] %v2087
    %2252 = vst [vmem:[#allocation2 + $0x1c0] sm:$0xff] %v2089
    %2253 = vst [vmem:[#allocation2 + $0x1c8] sm:$0xff] %v2090
    %2254 = vst [vmem:[#allocation2 + $0x1d0] sm:$0xff] %v2092
    %2255 = vst [vmem:[#allocation2 + $0x1d8] sm:$0xff] %v2093
    %2256 = vst [vmem:[#allocation2 + $0x1e0] sm:$0xff] %v2095
    %2257 = vst [vmem:[#allocation2 + $0x1e8] sm:$0xff] %v2096
    %2258 = vst [vmem:[#allocation2 + $0x1f0] sm:$0xff] %v2098
    %2259 = vst [vmem:[#allocation2 + $0x1f8] sm:$0xff] %v2099
    %2260 = vst [vmem:[#allocation2 + $0x200] sm:$0xff] %v2101
    %2261 = vst [vmem:[#allocation2 + $0x208] sm:$0xff] %v2102
    %2262 = vst [vmem:[#allocation2 + $0x210] sm:$0xff] %v2104
    %2263 = vst [vmem:[#allocation2 + $0x218] sm:$0xff] %v2105
    %2264 = vst [vmem:[#allocation2 + $0x220] sm:$0xff] %v2107
    %2265 = vst [vmem:[#allocation2 + $0x228] sm:$0xff] %v2108
    %2266 = vst [vmem:[#allocation2 + $0x230] sm:$0xff] %v2110
    %2267 = vst [vmem:[#allocation2 + $0x238] sm:$0xff] %v2111
    %2268 = vst [vmem:[#allocation2 + $0x240] sm:$0xff] %v2113
    %2269 = vst [vmem:[#allocation2 + $0x248] sm:$0xff] %v2114
    %2270 = vst [vmem:[#allocation2 + $0x250] sm:$0xff] %v2116
    %2271 = vst [vmem:[#allocation2 + $0x258] sm:$0xff] %v2117
    %2272 = vst [vmem:[#allocation2 + $0x260] sm:$0xff] %v2119
    %2273 = vst [vmem:[#allocation2 + $0x268] sm:$0xff] %v2120
    %2274 = vst [vmem:[#allocation2 + $0x270] sm:$0xff] %v2122
    %2275 = vst [vmem:[#allocation2 + $0x278] sm:$0xff] %v2123
    %2276 = vst [vmem:[#allocation2 + $0x280] sm:$0xff] %v2125
    %2277 = vst [vmem:[#allocation2 + $0x288] sm:$0xff] %v2126
    %2278 = vst [vmem:[#allocation2 + $0x290] sm:$0xff] %v2128
    %2279 = vst [vmem:[#allocation2 + $0x298] sm:$0xff] %v2129
    %2280 = vst [vmem:[#allocation2 + $0x2a0] sm:$0xff] %v2131
    %2281 = vst [vmem:[#allocation2 + $0x2a8] sm:$0xff] %v2132
    %2282 = vst [vmem:[#allocation2 + $0x2b0] sm:$0xff] %v2134
    %2283 = vst [vmem:[#allocation2 + $0x2b8] sm:$0xff] %v2135
    %2284 = vst [vmem:[#allocation2 + $0x2c0] sm:$0xff] %v2137
    %2285 = vst [vmem:[#allocation2 + $0x2c8] sm:$0xff] %v2138
    %2286 = vst [vmem:[#allocation2 + $0x2d0] sm:$0xff] %v2140
    %2287 = vst [vmem:[#allocation2 + $0x2d8] sm:$0xff] %v2141
    %2288 = vst [vmem:[#allocation2 + $0x2e0] sm:$0xff] %v2143
    %2289 = vst [vmem:[#allocation2 + $0x2e8] sm:$0xff] %v2144
    %2290 = vst [vmem:[#allocation2 + $0x2f0] sm:$0xff] %v2146
    %2291 = vst [vmem:[#allocation2 + $0x2f8] sm:$0xff] %v2147
    %2292 = vst [vmem:[#allocation2 + $0x300] sm:$0xff] %v2149
    %2293 = vst [vmem:[#allocation2 + $0x308] sm:$0xff] %v2150
    %2294 = vst [vmem:[#allocation2 + $0x310] sm:$0xff] %v2152
    %2295 = vst [vmem:[#allocation2 + $0x318] sm:$0xff] %v2153
    %2296 = vst [vmem:[#allocation2 + $0x320] sm:$0xff] %v2155
    %2297 = vst [vmem:[#allocation2 + $0x328] sm:$0xff] %v2156
    %2298 = vst [vmem:[#allocation2 + $0x330] sm:$0xff] %v2158
    %2299 = vst [vmem:[#allocation2 + $0x338] sm:$0xff] %v2159
    %2300 = vst [vmem:[#allocation2 + $0x340] sm:$0xff] %v2161
    %2301 = vst [vmem:[#allocation2 + $0x348] sm:$0xff] %v2162
    %2302 = vst [vmem:[#allocation2 + $0x350] sm:$0xff] %v2164
    %2303 = vst [vmem:[#allocation2 + $0x358] sm:$0xff] %v2165
    %2304 = vst [vmem:[#allocation2 + $0x360] sm:$0xff] %v2167
    %2305 = vst [vmem:[#allocation2 + $0x368] sm:$0xff] %v2168
    %2306 = vst [vmem:[#allocation2 + $0x370] sm:$0xff] %v2170
    %2307 = vst [vmem:[#allocation2 + $0x378] sm:$0xff] %v2171
    %2308 = vst [vmem:[#allocation2 + $0x380] sm:$0xff] %v2173
    %2309 = vst [vmem:[#allocation2 + $0x388] sm:$0xff] %v2174
    %2310 = vst [vmem:[#allocation2 + $0x390] sm:$0xff] %v2176
    %2311 = vst [vmem:[#allocation2 + $0x398] sm:$0xff] %v2177
    %2312 = vst [vmem:[#allocation2 + $0x3a0] sm:$0xff] %v2179
    %2313 = vst [vmem:[#allocation2 + $0x3a8] sm:$0xff] %v2180
    %2314 = vst [vmem:[#allocation2 + $0x3b0] sm:$0xff] %v2182
    %2315 = vst [vmem:[#allocation2 + $0x3b8] sm:$0xff] %v2183
    %2316 = vst [vmem:[#allocation2 + $0x3c0] sm:$0xff] %v2185
    %2317 = vst [vmem:[#allocation2 + $0x3c8] sm:$0xff] %v2186
    %2318 = vst [vmem:[#allocation2 + $0x3d0] sm:$0xff] %v2188
    %2319 = vst [vmem:[#allocation2 + $0x3d8] sm:$0xff] %v2189
    %2320 = vst [vmem:[#allocation2 + $0x3e0] sm:$0xff] %v2191
    %2321 = vst [vmem:[#allocation2 + $0x3e8] sm:$0xff] %v2192
    %2322 = vst [vmem:[#allocation2 + $0x3f0] sm:$0xff] %v2194
    %2323 = vst [vmem:[#allocation2 + $0x3f8] sm:$0xff] %v2195
    %v2324 = vadd.f32 %v2005, %v2008
    %v2325 = vadd.f32 %v2324, %v2011
    %v2326 = vadd.f32 %v2325, %v2014
    %v2327 = vadd.f32 %v2326, %v2017
    %v2328 = vadd.f32 %v2327, %v2020
    %v2329 = vadd.f32 %v2328, %v2023
    %v2330 = vadd.f32 %v2329, %v2026
    %v2331 = vadd.f32 %v2330, %v2029
    %v2332 = vadd.f32 %v2331, %v2032
    %v2333 = vadd.f32 %v2332, %v2035
    %v2334 = vadd.f32 %v2333, %v2038
    %v2335 = vadd.f32 %v2334, %v2041
    %v2336 = vadd.f32 %v2335, %v2044
    %v2337 = vadd.f32 %v2336, %v2047
    %v2338 = vadd.f32 %v2337, %v2050
    %v2339 = vadd.f32 %v2338, %v2053
    %v2340 = vadd.f32 %v2339, %v2056
    %v2341 = vadd.f32 %v2340, %v2059
    %v2342 = vadd.f32 %v2341, %v2062
    %v2343 = vadd.f32 %v2342, %v2065
    %v2344 = vadd.f32 %v2343, %v2068
    %v2345 = vadd.f32 %v2344, %v2071
    %v2346 = vadd.f32 %v2345, %v2074
    %v2347 = vadd.f32 %v2346, %v2077
    %v2348 = vadd.f32 %v2347, %v2080
    %v2349 = vadd.f32 %v2348, %v2083
    %v2350 = vadd.f32 %v2349, %v2086
    %v2351 = vadd.f32 %v2350, %v2089
    %v2352 = vadd.f32 %v2351, %v2092
    %v2353 = vadd.f32 %v2352, %v2095
    %v2354 = vadd.f32 %v2353, %v2098
    %v2355 = vrot.slane %v2354, 4
    %v2356 = vadd.f32 %v2354, %v2355
    %v2357 = vrot.slane %v2356, 2
    %v2358 = vadd.f32 %v2356, %v2357
    %v2359 = vrot.slane %v2358, 1
    %v2360 = vadd.f32 %v2358, %v2359
    %v2361 = vadd.f32 %v2006, %v2009
    %v2362 = vadd.f32 %v2361, %v2012
    %v2363 = vadd.f32 %v2362, %v2015
    %v2364 = vadd.f32 %v2363, %v2018
    %v2365 = vadd.f32 %v2364, %v2021
    %v2366 = vadd.f32 %v2365, %v2024
    %v2367 = vadd.f32 %v2366, %v2027
    %v2368 = vadd.f32 %v2367, %v2030
    %v2369 = vadd.f32 %v2368, %v2033
    %v2370 = vadd.f32 %v2369, %v2036
    %v2371 = vadd.f32 %v2370, %v2039
    %v2372 = vadd.f32 %v2371, %v2042
    %v2373 = vadd.f32 %v2372, %v2045
    %v2374 = vadd.f32 %v2373, %v2048
    %v2375 = vadd.f32 %v2374, %v2051
    %v2376 = vadd.f32 %v2375, %v2054
    %v2377 = vadd.f32 %v2376, %v2057
    %v2378 = vadd.f32 %v2377, %v2060
    %v2379 = vadd.f32 %v2378, %v2063
    %v2380 = vadd.f32 %v2379, %v2066
    %v2381 = vadd.f32 %v2380, %v2069
    %v2382 = vadd.f32 %v2381, %v2072
    %v2383 = vadd.f32 %v2382, %v2075
    %v2384 = vadd.f32 %v2383, %v2078
    %v2385 = vadd.f32 %v2384, %v2081
    %v2386 = vadd.f32 %v2385, %v2084
    %v2387 = vadd.f32 %v2386, %v2087
    %v2388 = vadd.f32 %v2387, %v2090
    %v2389 = vadd.f32 %v2388, %v2093
    %v2390 = vadd.f32 %v2389, %v2096
    %v2391 = vadd.f32 %v2390, %v2099
    %v2392 = vrot.slane %v2391, 4
    %v2393 = vadd.f32 %v2391, %v2392
    %v2394 = vrot.slane %v2393, 2
    %v2395 = vadd.f32 %v2393, %v2394
    %v2396 = vrot.slane %v2395, 1
    %v2397 = vadd.f32 %v2395, %v2396
    %v2398 = vadd.f32 %v2101, %v2104
    %v2399 = vadd.f32 %v2398, %v2107
    %v2400 = vadd.f32 %v2399, %v2110
    %v2401 = vadd.f32 %v2400, %v2113
    %v2402 = vadd.f32 %v2401, %v2116
    %v2403 = vadd.f32 %v2402, %v2119
    %v2404 = vadd.f32 %v2403, %v2122
    %v2405 = vadd.f32 %v2404, %v2125
    %v2406 = vadd.f32 %v2405, %v2128
    %v2407 = vadd.f32 %v2406, %v2131
    %v2408 = vadd.f32 %v2407, %v2134
    %v2409 = vadd.f32 %v2408, %v2137
    %v2410 = vadd.f32 %v2409, %v2140
    %v2411 = vadd.f32 %v2410, %v2143
    %v2412 = vadd.f32 %v2411, %v2146
    %v2413 = vadd.f32 %v2412, %v2149
    %v2414 = vadd.f32 %v2413, %v2152
    %v2415 = vadd.f32 %v2414, %v2155
    %v2416 = vadd.f32 %v2415, %v2158
    %v2417 = vadd.f32 %v2416, %v2161
    %v2418 = vadd.f32 %v2417, %v2164
    %v2419 = vadd.f32 %v2418, %v2167
    %v2420 = vadd.f32 %v2419, %v2170
    %v2421 = vadd.f32 %v2420, %v2173
    %v2422 = vadd.f32 %v2421, %v2176
    %v2423 = vadd.f32 %v2422, %v2179
    %v2424 = vadd.f32 %v2423, %v2182
    %v2425 = vadd.f32 %v2424, %v2185
    %v2426 = vadd.f32 %v2425, %v2188
    %v2427 = vadd.f32 %v2426, %v2191
    %v2428 = vadd.f32 %v2427, %v2194
    %v2429 = vrot.slane %v2428, 4
    %v2430 = vadd.f32 %v2428, %v2429
    %v2431 = vrot.slane %v2430, 2
    %v2432 = vadd.f32 %v2430, %v2431
    %v2433 = vrot.slane %v2432, 1
    %v2434 = vadd.f32 %v2432, %v2433
    %v2435 = vadd.f32 %v2102, %v2105
    %v2436 = vadd.f32 %v2435, %v2108
    %v2437 = vadd.f32 %v2436, %v2111
    %v2438 = vadd.f32 %v2437, %v2114
    %v2439 = vadd.f32 %v2438, %v2117
    %v2440 = vadd.f32 %v2439, %v2120
    %v2441 = vadd.f32 %v2440, %v2123
    %v2442 = vadd.f32 %v2441, %v2126
    %v2443 = vadd.f32 %v2442, %v2129
    %v2444 = vadd.f32 %v2443, %v2132
    %v2445 = vadd.f32 %v2444, %v2135
    %v2446 = vadd.f32 %v2445, %v2138
    %v2447 = vadd.f32 %v2446, %v2141
    %v2448 = vadd.f32 %v2447, %v2144
    %v2449 = vadd.f32 %v2448, %v2147
    %v2450 = vadd.f32 %v2449, %v2150
    %v2451 = vadd.f32 %v2450, %v2153
    %v2452 = vadd.f32 %v2451, %v2156
    %v2453 = vadd.f32 %v2452, %v2159
    %v2454 = vadd.f32 %v2453, %v2162
    %v2455 = vadd.f32 %v2454, %v2165
    %v2456 = vadd.f32 %v2455, %v2168
    %v2457 = vadd.f32 %v2456, %v2171
    %v2458 = vadd.f32 %v2457, %v2174
    %v2459 = vadd.f32 %v2458, %v2177
    %v2460 = vadd.f32 %v2459, %v2180
    %v2461 = vadd.f32 %v2460, %v2183
    %v2462 = vadd.f32 %v2461, %v2186
    %v2463 = vadd.f32 %v2462, %v2189
    %v2464 = vadd.f32 %v2463, %v2192
    %v2465 = vadd.f32 %v2464, %v2195
    %v2466 = vrot.slane %v2465, 4
    %v2467 = vadd.f32 %v2465, %v2466
    %v2468 = vrot.slane %v2467, 2
    %v2469 = vadd.f32 %v2467, %v2468
    %v2470 = vrot.slane %v2469, 1
    %v2471 = vadd.f32 %v2469, %v2470
    %v2472 = vrcp.pop 256.0
    %v2473 = vmul.f32 %v2360, %v2472
    %v2474 = vmul.f32 %v2397, %v2472
    %v2475 = vmul.f32 %v2434, %v2472
    %v2476 = vmul.f32 %v2471, %v2472
    %v2477 = vmul.f32 %v2473, %v660
    %v2478 = vmul.f32 %v2474, %v661
    %v2479 = vmul.f32 %v2475, %v662
    %v2480 = vmul.f32 %v2476, %v663
    %v2481 = vadd.f32 %v2477, %v2478
    %2482 = vadd.xlane.f32.xlu0 %v2481
    %v2483 = vpop.xlane.xlu0 %2482
    %v2484 = vadd.f32 %v2479, %v2480
    %2485 = vadd.xlane.f32.xlu0 %v2484
    %v2486 = vpop.xlane.xlu0 %2485
    %v2487 = vadd.f32 %v656, %v657
    %2488 = vadd.xlane.f32.xlu0 %v2487
    %v2489 = vpop.xlane.xlu0 %2488
    %v2490 = vadd.f32 %v658, %v659
    %2491 = vadd.xlane.f32.xlu0 %v2490
    %v2492 = vpop.xlane.xlu0 %2491
    %v2493 = vmul.f32 %v2489, %v2472
    %v2494 = vmul.f32 %v2492, %v2472
    %v2497 = vlaneseq
    %v2498 = vand.u32 %v2497, 127
    %v2499 = vlaneseq
    %v2500 = vshrl.u32 %v2499, 7
    %v2501 = vsub.s32 %v2498, %v2500
    %v2502 = vrot.slane %v2483, %v2501
    %v2503 = vlaneseq
    %v2504 = vshrl.u32 %v2503, 7
    %v2505 = vsub.s32 %v2498, %v2504
    %v2506 = vrot.slane %v2486, %v2505
    %v2507 = vsel %vm126, %v2506, %v2502
    %v2511 = vlaneseq
    %v2512 = vshrl.u32 %v2511, 7
    %v2513 = vsub.s32 %v2498, %v2512
    %v2514 = vrot.slane %v2493, %v2513
    %v2515 = vlaneseq
    %v2516 = vshrl.u32 %v2515, 7
    %v2517 = vsub.s32 %v2498, %v2516
    %v2518 = vrot.slane %v2494, %v2517
    %v2519 = vsel %vm130, %v2518, %v2514
    %vm2521 = vcmask 1041408
    %v2522 = vsel %vm2521, %v2507, %v2519
    %v2523 = vld [vmem:[%s3] sm:$0xff]
    %v2525 = vsel %vm708, %v2522, 0
    %2527 = vmatprep.subr.mxu0 0.0
    %2528 = vmatpush1.msra.mxu0 %v2523
    %2529 = vmatprep.subr.mxu0 0.0
    %2530 = vmatpush1.msra.mxu0 0.0
    %2531 = vmatprep.subr.mxu0 0.0
    %2532 = vmatpush1.msra.mxu0 0.0
    %2533 = vmatprep.subr.mxu0 0.0
    %2534 = vmatpush1.msra.mxu0 0.0
    %2535 = vmatprep.subr.mxu0 0.0
    %2536 = vmatpush1.msra.mxu0 0.0
    %2537 = vmatprep.subr.mxu0 0.0
    %2538 = vmatpush1.msra.mxu0 0.0
    %2539 = vmatprep.subr.mxu0 0.0
    %2540 = vmatpush1.msra.mxu0 0.0
    %2541 = vmatprep.subr.mxu0 0.0
    %2542 = vmatpush1.msra.mxu0 0.0
    %2543 = vmatprep.subr.mxu0 0.0
    %2544 = vmatpush1.msra.mxu0 0.0
    %2545 = vmatprep.subr.mxu0 0.0
    %2546 = vmatpush1.msra.mxu0 0.0
    %2547 = vmatprep.subr.mxu0 0.0
    %2548 = vmatpush1.msra.mxu0 0.0
    %2549 = vmatprep.subr.mxu0 0.0
    %2550 = vmatpush1.msra.mxu0 0.0
    %2551 = vmatprep.subr.mxu0 0.0
    %2552 = vmatpush1.msra.mxu0 0.0
    %2553 = vmatprep.subr.mxu0 0.0
    %2554 = vmatpush1.msra.mxu0 0.0
    %2555 = vmatprep.subr.mxu0 0.0
    %2556 = vmatpush1.msra.mxu0 0.0
    %2557 = vmatprep.subr.mxu0 0.0
    %2558 = vmatpush1.msra.mxu0 0.0
    %2559 = vmatprep.subr.mxu0 0.0
    %2560 = vmatpush1.msra.mxu0 0.0
    %2561 = vmatprep.subr.mxu0 0.0
    %2562 = vmatpush1.msra.mxu0 0.0
    %2563 = vmatprep.subr.mxu0 0.0
    %2564 = vmatpush1.msra.mxu0 0.0
    %2565 = vmatprep.subr.mxu0 0.0
    %2566 = vmatpush1.msra.mxu0 0.0
    %2567 = vmatprep.subr.mxu0 0.0
    %2568 = vmatpush1.msra.mxu0 0.0
    %2569 = vmatprep.subr.mxu0 0.0
    %2570 = vmatpush1.msra.mxu0 0.0
    %2571 = vmatprep.subr.mxu0 0.0
    %2572 = vmatpush1.msra.mxu0 0.0
    %2573 = vmatprep.subr.mxu0 0.0
    %2574 = vmatpush1.msra.mxu0 0.0
    %2575 = vmatprep.subr.mxu0 0.0
    %2576 = vmatpush1.msra.mxu0 0.0
    %2577 = vmatprep.subr.mxu0 0.0
    %2578 = vmatpush1.msra.mxu0 0.0
    %2579 = vmatprep.subr.mxu0 0.0
    %2580 = vmatpush1.msra.mxu0 0.0
    %2581 = vmatprep.subr.mxu0 0.0
    %2582 = vmatpush1.msra.mxu0 0.0
    %2583 = vmatprep.subr.mxu0 0.0
    %2584 = vmatpush1.msra.mxu0 0.0
    %2585 = vmatprep.subr.mxu0 0.0
    %2586 = vmatpush1.msra.mxu0 0.0
    %2587 = vmatprep.subr.mxu0 0.0
    %2588 = vmatpush1.msra.mxu0 0.0
    %2589 = vmatprep.subr.mxu0 0.0
    %2590 = vmatpush1.msra.mxu0 0.0
    %2591 = vmatprep.mubr.f32.mxu0 0.0
    %2592 = vmatmul.mubr.f32.gmra.mrb[0].mxu0 %v2525
    %v2593 = vpop.f32.mrb[0].mxu0
    %v2594 = vadd.f32 0.0, %v2593
    %v2595 = vpop.f32.mrb[0].mxu0
    %2596 = vdwg.mxu0
    %v2597 = vadd.f32 %v475, %v2594
    %v2599 = vrot.slane %v2597, 2
    %2600 = vrot.lane.b32.xlu0 %v2599, 64
    %v2601 = vpop.permute.xlu0 %2600
    %vm2603 = vcmask 523264
    %v2604 = vsel %vm2603, %v2597, %v2601
    %2605 = vst [vmem:[%s4] sm:$0x3] %v2604
    // Predicated region
    $region18: #{facor_forward.1} parent=1 // pred_check
      _
    $region19: #{facor_forward.1} parent=1 // pred_check_branch
      %2607 = sbr.rel (0) target = $region21
    $region20: #{facor_forward.1} parent=1 // pred_region
      _
    $region21: #{facor_forward.1} parent=1 // pred_fallthru
      _
    // Predicated region
    $region22: #{facor_forward.1} parent=1 // pred_check
      _
    $region23: #{facor_forward.1} parent=1 // pred_check_branch
      %2609 = sbr.rel (0) target = $region25
    $region24: #{facor_forward.1} parent=1 // pred_region
      %s2611 = ssub.s32 16384, 16384
      %2612 = vsyncadd [#allocation3], %s2611
      %s2613 = sshll.u32 [#allocation2], 4
      %s2614 = int_to_ptr.vmem [resolvable:$true] %s2613
      %2619 = dma.vmem_to_hbm [thread:$0]  %s2614, 16384, %s5, [#allocation3], 256, 256, 16
    $region25: #{facor_forward.1} parent=1 // pred_fallthru
      _
    // Predicated region
    $region26: #{facor_forward.1} parent=1 // pred_check
      _
    $region27: #{facor_forward.1} parent=1 // pred_check_branch
      %2621 = sbr.rel (0) target = $region29
    $region28: #{facor_forward.1} parent=1 // pred_region
      _
    $region29: #{facor_forward.1} parent=1 // pred_fallthru
      _
    // Predicated region
    $region30: #{facor_forward.1} parent=1 // pred_check
      _
    $region31: #{facor_forward.1} parent=1 // pred_check_branch
      %2623 = sbr.rel (0) target = $region33
    $region32: #{facor_forward.1} parent=1 // pred_region
      %2624 = dma.done [#allocation3], 16384
    $region33: #{facor_forward.1} parent=1 // pred_fallthru
      _
    %2625 = vsyncpa [#allocation3], 1

</llo_original>
